<compile_context>
chip_gen: v7x
topology: tpu7x:2x2x1
jax: 0.10.0
libtpu: 0.0.40
codegen_flags: <defaults>
</compile_context>

<pallas_src>
import functools

import jax
import jax.numpy as jnp
from jax.experimental import pallas as pl
from jax.experimental.pallas import tpu as pltpu


# ------------------------------ Fused kernel ------------------------------- #

def _make_fused_caption_kernel(T, B, E, H, num_layers):
    """Builds the fused forward kernel for static (T, B, E, H, num_layers)."""

    def kernel(*refs):
        # inputs
        feat_ref, emb_ref, wf_ref, we_ref, br_ref = refs[0:5]
        layer_refs = refs[5:5 + 3 * num_layers]          # [wih, whh, b] * L
        wout_ref = refs[5 + 3 * num_layers]
        bout_ref = refs[6 + 3 * num_layers]
        # output / scratch
        o_ref = refs[7 + 3 * num_layers]                 # (T*B, Vp)
        y_ref = refs[8 + 3 * num_layers]                 # (T*B, H) scratch

        f32 = jnp.float32

        # --- reduce_dim without materializing the (B, T, 2E) concat ---------
        # feat half of the Linear, computed once per batch row.
        feat_g = jnp.dot(feat_ref[...], wf_ref[...],
                         preferred_element_type=f32)                  # (B, E)
        feat_rows = jnp.concatenate([feat_g] * T, axis=0)             # (T*B, E), row t*B+b
        cur = (jnp.dot(emb_ref[...], we_ref[...],
                       preferred_element_type=f32)
               + br_ref[...] + feat_rows)                             # (T*B, E)

        # --- multi-layer LSTM -----------------------------------------------
        for l in range(num_layers):
            wih = layer_refs[3 * l][...]                              # (in, 4H)
            whh = layer_refs[3 * l + 1][...]                          # (H, 4H)
            b = layer_refs[3 * l + 2][...]                            # (1, 4H)

            # Input projection + bias hoisted out of the recurrence:
            # one matmul over all timesteps, bias folded in here.
            gx = jnp.dot(cur, wih, preferred_element_type=f32) + b    # (T*B, 4H)

            h = jnp.zeros((B, H), f32)
            c = jnp.zeros((B, H), f32)
            for t in range(T):  # static unroll: T is a compile-time constant
                r = (jnp.dot(h, whh, preferred_element_type=f32)
                     + gx[t * B:(t + 1) * B, :])                      # (B, 4H)
                # PyTorch gate order: i, f, g, o
                i_g = jax.nn.sigmoid(r[:, 0 * H:1 * H])
                f_g = jax.nn.sigmoid(r[:, 1 * H:2 * H])
                g_g = jnp.tanh(r[:, 2 * H:3 * H])
                o_g = jax.nn.sigmoid(r[:, 3 * H:4 * H])
                c = f_g * c + i_g * g_g
                h = o_g * jnp.tanh(c)
                y_ref[pl.ds(t * B, B), :] = h
            cur = y_ref[...]                                          # (T*B, H)

        # --- output Linear, vocab padded to lane-dense width ----------------
        o_ref[...] = (jnp.dot(cur, wout_ref[...], preferred_element_type=f32)
                      + bout_ref[...])                                # (T*B, Vp)

    return kernel


# ----------------------------- Parameter setup ----------------------------- #

def init_params(key, vocab_size, embed_size, hidden_size, num_layers):
    ks = jax.random.split(key, 4 + 4 * num_layers)
    kit = iter(ks)

    def unif(k, shape, scale):
        return jax.random.uniform(k, shape, jnp.float32, -scale, scale)

    params = {}
    params["embed"] = jax.random.normal(next(kit), (vocab_size, embed_size), jnp.float32)

    s_red = 1.0 / jnp.sqrt(2.0 * embed_size)
    params["reduce_w_t"] = unif(next(kit), (2 * embed_size, embed_size), s_red)  # (in, out)
    params["reduce_b"] = unif(next(kit), (embed_size,), s_red)

    s_h = 1.0 / jnp.sqrt(float(hidden_size))
    layers = []
    for l in range(num_layers):
        in_sz = embed_size if l == 0 else hidden_size
        wih_t = unif(next(kit), (in_sz, 4 * hidden_size), s_h)        # (in, 4H)
        whh_t = unif(next(kit), (hidden_size, 4 * hidden_size), s_h)  # (H, 4H)
        b = unif(next(kit), (4 * hidden_size,), s_h) + unif(next(kit), (4 * hidden_size,), s_h)
        layers.append((wih_t, whh_t, b))
    params["lstm"] = layers

    s_out = 1.0 / jnp.sqrt(float(hidden_size))
    kf = jax.random.split(ks[-1], 2)
    params["out_w_t"] = unif(kf[0], (hidden_size, vocab_size), s_out)
    params["out_b"] = unif(kf[1], (vocab_size,), s_out)
    return params


# ------------------------------- Forward pass ------------------------------ #

def caption_generator_forward(params, features, captions):
    # features: (B, E) float32, captions: (B, T) int32
    B, T = captions.shape
    E = params["embed"].shape[1]
    H = params["lstm"][0][1].shape[0]
    V = params["out_w_t"].shape[1]
    num_layers = len(params["lstm"])
    Vp = ((V + 127) // 128) * 128  # lane-dense (multiple of 128) output width

    # TODO(synk): data-dependent embedding row gather stays in XLA (outside the kernel).
    emb_tm = jnp.take(params["embed"], captions.T, axis=0)            # (T, B, E) time-major
    emb_flat = emb_tm.reshape(T * B, E)                               # row t*B + b

    # Split the reduce_dim weight -> no (B, T, 2E) concat slab anywhere.
    w_feat = params["reduce_w_t"][:E, :]                              # multiplies features
    w_emb = params["reduce_w_t"][E:, :]                               # multiplies embeddings
    b_red = params["reduce_b"].reshape(1, -1)

    layer_args = []
    for wih_t, whh_t, b in params["lstm"]:
        layer_args += [wih_t, whh_t, b.reshape(1, -1)]

    wout_p = jnp.pad(params["out_w_t"], ((0, 0), (0, Vp - V)))        # (H, Vp)
    bout_p = jnp.pad(params["out_b"], (0, Vp - V)).reshape(1, -1)     # (1, Vp)

    n_in = 7 + 3 * num_layers
    kernel = _make_fused_caption_kernel(T, B, E, H, num_layers)

    out = pl.pallas_call(
        kernel,
        out_shape=jax.ShapeDtypeStruct((T * B, Vp), jnp.float32),
        in_specs=[pl.BlockSpec(memory_space=pltpu.MemorySpace.VMEM)] * n_in,
        out_specs=pl.BlockSpec(memory_space=pltpu.MemorySpace.VMEM),
        scratch_shapes=[pltpu.VMEM((T * B, H), jnp.float32)],
    )(features, emb_flat, w_feat, w_emb, b_red, *layer_args, wout_p, bout_p)

    # Strip vocab padding and return batch-major (B, T, V).
    return out.reshape(T, B, Vp)[:, :, :V].transpose(1, 0, 2)


# ----------------------------------- Main ----------------------------------- #

if __name__ == "__main__":
    vocab_size, embed_size, hidden_size, num_layers = 32, 16, 32, 2
    batch, seq = 2, 8

    key = jax.random.PRNGKey(0)
    k_params, k_feat, k_cap = jax.random.split(key, 3)

    params = init_params(k_params, vocab_size, embed_size, hidden_size, num_layers)
    features = jax.random.normal(k_feat, (batch, embed_size), jnp.float32)
    captions = jax.random.randint(k_cap, (batch, seq), 0, vocab_size, jnp.int32)

    fwd = jax.jit(functools.partial(caption_generator_forward, params))
    out = fwd(features, captions)
    jax.block_until_ready(out)

    assert out.shape == (batch, seq, vocab_size), out.shape
    assert out.dtype == jnp.float32
    assert bool(jnp.all(jnp.isfinite(out)))
    print("KERNEL_OK")
</pallas_src>

<mosaic_0001>
module attributes {stable_mosaic.version = 11 : i64} {
  func.func @kernel(%arg0: memref<2x16xf32, #tpu.memory_space<vmem>>, %arg1: memref<16x16xf32, #tpu.memory_space<vmem>>, %arg2: memref<16x16xf32, #tpu.memory_space<vmem>>, %arg3: memref<16x16xf32, #tpu.memory_space<vmem>>, %arg4: memref<1x16xf32, #tpu.memory_space<vmem>>, %arg5: memref<16x128xf32, #tpu.memory_space<vmem>>, %arg6: memref<32x128xf32, #tpu.memory_space<vmem>>, %arg7: memref<1x128xf32, #tpu.memory_space<vmem>>, %arg8: memref<32x128xf32, #tpu.memory_space<vmem>>, %arg9: memref<32x128xf32, #tpu.memory_space<vmem>>, %arg10: memref<1x128xf32, #tpu.memory_space<vmem>>, %arg11: memref<32x128xf32, #tpu.memory_space<vmem>>, %arg12: memref<1x128xf32, #tpu.memory_space<vmem>>, %arg13: memref<16x128xf32, #tpu.memory_space<vmem>>, %arg14: memref<16x32xf32, #tpu.memory_space<vmem>>) attributes {dimension_semantics = [], scalar_prefetch = 0 : i64, scratch_operands = 1 : i64, tpu.core_type = #tpu.core_type<tc>} {
    %c0 = arith.constant 0 : index
    %c0_0 = arith.constant 0 : index
    %0 = vector.load %arg0[%c0, %c0_0] : memref<2x16xf32, #tpu.memory_space<vmem>>, vector<2x16xf32>
    %c0_1 = arith.constant 0 : index
    %c0_2 = arith.constant 0 : index
    %1 = vector.load %arg2[%c0_1, %c0_2] : memref<16x16xf32, #tpu.memory_space<vmem>>, vector<16x16xf32>
    %cst = arith.constant dense<0.000000e+00> : vector<2x16xf32>
    %2 = tpu.matmul %0, %1, %cst {dimension_numbers = #tpu.dot_dimension_numbers<[1], [0], [0], [1], [0, 0, 1, 1], [], []>} : vector<2x16xf32>, vector<16x16xf32>, vector<2x16xf32> -> vector<2x16xf32>
    %3 = tpu.concatenate %2, %2, %2, %2, %2, %2, %2, %2 in 0 : vector<2x16xf32>, vector<2x16xf32>, vector<2x16xf32>, vector<2x16xf32>, vector<2x16xf32>, vector<2x16xf32>, vector<2x16xf32>, vector<2x16xf32> -> vector<16x16xf32>
    %c0_3 = arith.constant 0 : index
    %c0_4 = arith.constant 0 : index
    %4 = vector.load %arg1[%c0_3, %c0_4] : memref<16x16xf32, #tpu.memory_space<vmem>>, vector<16x16xf32>
    %c0_5 = arith.constant 0 : index
    %c0_6 = arith.constant 0 : index
    %5 = vector.load %arg3[%c0_5, %c0_6] : memref<16x16xf32, #tpu.memory_space<vmem>>, vector<16x16xf32>
    %cst_7 = arith.constant dense<0.000000e+00> : vector<16x16xf32>
    %6 = tpu.matmul %4, %5, %cst_7 {dimension_numbers = #tpu.dot_dimension_numbers<[1], [0], [0], [1], [0, 0, 1, 1], [], []>} : vector<16x16xf32>, vector<16x16xf32>, vector<16x16xf32> -> vector<16x16xf32>
    %c0_8 = arith.constant 0 : index
    %c0_9 = arith.constant 0 : index
    %7 = vector.load %arg4[%c0_8, %c0_9] : memref<1x16xf32, #tpu.memory_space<vmem>>, vector<1x16xf32>
    %8 = vector.broadcast %7 : vector<1x16xf32> to vector<16x16xf32>
    %9 = arith.addf %6, %8 : vector<16x16xf32>
    %10 = arith.addf %9, %3 : vector<16x16xf32>
    %c0_10 = arith.constant 0 : index
    %c0_11 = arith.constant 0 : index
    %11 = vector.load %arg5[%c0_10, %c0_11] : memref<16x128xf32, #tpu.memory_space<vmem>>, vector<16x128xf32>
    %c0_12 = arith.constant 0 : index
    %c0_13 = arith.constant 0 : index
    %12 = vector.load %arg6[%c0_12, %c0_13] : memref<32x128xf32, #tpu.memory_space<vmem>>, vector<32x128xf32>
    %c0_14 = arith.constant 0 : index
    %c0_15 = arith.constant 0 : index
    %13 = vector.load %arg7[%c0_14, %c0_15] : memref<1x128xf32, #tpu.memory_space<vmem>>, vector<1x128xf32>
    %cst_16 = arith.constant dense<0.000000e+00> : vector<16x128xf32>
    %14 = tpu.matmul %10, %11, %cst_16 {dimension_numbers = #tpu.dot_dimension_numbers<[1], [0], [0], [1], [0, 0, 1, 1], [], []>} : vector<16x16xf32>, vector<16x128xf32>, vector<16x128xf32> -> vector<16x128xf32>
    %15 = vector.broadcast %13 : vector<1x128xf32> to vector<16x128xf32>
    %16 = arith.addf %14, %15 : vector<16x128xf32>
    %cst_17 = arith.constant 0.000000e+00 : f32
    %17 = vector.broadcast %cst_17 : f32 to vector<2x32xf32>
    %cst_18 = arith.constant 0.000000e+00 : f32
    %18 = vector.broadcast %cst_18 : f32 to vector<2x32xf32>
    %cst_19 = arith.constant dense<0.000000e+00> : vector<2x128xf32>
    %19 = tpu.matmul %17, %12, %cst_19 {dimension_numbers = #tpu.dot_dimension_numbers<[1], [0], [0], [1], [0, 0, 1, 1], [], []>} : vector<2x32xf32>, vector<32x128xf32>, vector<2x128xf32> -> vector<2x128xf32>
    %20 = vector.extract_strided_slice %16 {offsets = [0, 0], sizes = [2, 128], strides = [1, 1]} : vector<16x128xf32> to vector<2x128xf32>
    %21 = arith.addf %19, %20 : vector<2x128xf32>
    %22 = vector.extract_strided_slice %21 {offsets = [0, 0], sizes = [2, 32], strides = [1, 1]} : vector<2x128xf32> to vector<2x32xf32>
    %23 = arith.negf %22 : vector<2x32xf32>
    %24 = math.exp %23 : vector<2x32xf32>
    %cst_20 = arith.constant 1.000000e+00 : f32
    %25 = vector.broadcast %cst_20 : f32 to vector<2x32xf32>
    %26 = arith.addf %25, %24 : vector<2x32xf32>
    %27 = arith.divf %25, %26 : vector<2x32xf32>
    %28 = vector.extract_strided_slice %21 {offsets = [0, 32], sizes = [2, 32], strides = [1, 1]} : vector<2x128xf32> to vector<2x32xf32>
    %29 = arith.negf %28 : vector<2x32xf32>
    %30 = math.exp %29 : vector<2x32xf32>
    %cst_21 = arith.constant 1.000000e+00 : f32
    %31 = vector.broadcast %cst_21 : f32 to vector<2x32xf32>
    %32 = arith.addf %31, %30 : vector<2x32xf32>
    %33 = arith.divf %31, %32 : vector<2x32xf32>
    %34 = vector.extract_strided_slice %21 {offsets = [0, 64], sizes = [2, 32], strides = [1, 1]} : vector<2x128xf32> to vector<2x32xf32>
    %35 = math.tanh %34 : vector<2x32xf32>
    %36 = vector.extract_strided_slice %21 {offsets = [0, 96], sizes = [2, 32], strides = [1, 1]} : vector<2x128xf32> to vector<2x32xf32>
    %37 = arith.negf %36 : vector<2x32xf32>
    %38 = math.exp %37 : vector<2x32xf32>
    %cst_22 = arith.constant 1.000000e+00 : f32
    %39 = vector.broadcast %cst_22 : f32 to vector<2x32xf32>
    %40 = arith.addf %39, %38 : vector<2x32xf32>
    %41 = arith.divf %39, %40 : vector<2x32xf32>
    %42 = arith.mulf %33, %18 : vector<2x32xf32>
    %43 = arith.mulf %27, %35 : vector<2x32xf32>
    %44 = arith.addf %42, %43 : vector<2x32xf32>
    %45 = math.tanh %44 : vector<2x32xf32>
    %46 = arith.mulf %41, %45 : vector<2x32xf32>
    %c0_23 = arith.constant 0 : index
    %c0_24 = arith.constant 0 : index
    %47 = vector.load %arg14[%c0_23, %c0_24] : memref<16x32xf32, #tpu.memory_space<vmem>>, vector<2x32xf32>
    tpu.vector_store %arg14[%c0_23, %c0_24], %46 {strides = array<i32>} : memref<16x32xf32, #tpu.memory_space<vmem>>, vector<2x32xf32>,
    %cst_25 = arith.constant dense<0.000000e+00> : vector<2x128xf32>
    %48 = tpu.matmul %46, %12, %cst_25 {dimension_numbers = #tpu.dot_dimension_numbers<[1], [0], [0], [1], [0, 0, 1, 1], [], []>} : vector<2x32xf32>, vector<32x128xf32>, vector<2x128xf32> -> vector<2x128xf32>
    %49 = vector.extract_strided_slice %16 {offsets = [2, 0], sizes = [2, 128], strides = [1, 1]} : vector<16x128xf32> to vector<2x128xf32>
    %50 = arith.addf %48, %49 : vector<2x128xf32>
    %51 = vector.extract_strided_slice %50 {offsets = [0, 0], sizes = [2, 32], strides = [1, 1]} : vector<2x128xf32> to vector<2x32xf32>
    %52 = arith.negf %51 : vector<2x32xf32>
    %53 = math.exp %52 : vector<2x32xf32>
    %cst_26 = arith.constant 1.000000e+00 : f32
    %54 = vector.broadcast %cst_26 : f32 to vector<2x32xf32>
    %55 = arith.addf %54, %53 : vector<2x32xf32>
    %56 = arith.divf %54, %55 : vector<2x32xf32>
    %57 = vector.extract_strided_slice %50 {offsets = [0, 32], sizes = [2, 32], strides = [1, 1]} : vector<2x128xf32> to vector<2x32xf32>
    %58 = arith.negf %57 : vector<2x32xf32>
    %59 = math.exp %58 : vector<2x32xf32>
    %cst_27 = arith.constant 1.000000e+00 : f32
    %60 = vector.broadcast %cst_27 : f32 to vector<2x32xf32>
    %61 = arith.addf %60, %59 : vector<2x32xf32>
    %62 = arith.divf %60, %61 : vector<2x32xf32>
    %63 = vector.extract_strided_slice %50 {offsets = [0, 64], sizes = [2, 32], strides = [1, 1]} : vector<2x128xf32> to vector<2x32xf32>
    %64 = math.tanh %63 : vector<2x32xf32>
    %65 = vector.extract_strided_slice %50 {offsets = [0, 96], sizes = [2, 32], strides = [1, 1]} : vector<2x128xf32> to vector<2x32xf32>
    %66 = arith.negf %65 : vector<2x32xf32>
    %67 = math.exp %66 : vector<2x32xf32>
    %cst_28 = arith.constant 1.000000e+00 : f32
    %68 = vector.broadcast %cst_28 : f32 to vector<2x32xf32>
    %69 = arith.addf %68, %67 : vector<2x32xf32>
    %70 = arith.divf %68, %69 : vector<2x32xf32>
    %71 = arith.mulf %62, %44 : vector<2x32xf32>
    %72 = arith.mulf %56, %64 : vector<2x32xf32>
    %73 = arith.addf %71, %72 : vector<2x32xf32>
    %74 = math.tanh %73 : vector<2x32xf32>
    %75 = arith.mulf %70, %74 : vector<2x32xf32>
    %c2 = arith.constant 2 : index
    %c0_29 = arith.constant 0 : index
    %76 = vector.load %arg14[%c2, %c0_29] : memref<16x32xf32, #tpu.memory_space<vmem>>, vector<2x32xf32>
    tpu.vector_store %arg14[%c2, %c0_29], %75 {strides = array<i32>} : memref<16x32xf32, #tpu.memory_space<vmem>>, vector<2x32xf32>,
    %cst_30 = arith.constant dense<0.000000e+00> : vector<2x128xf32>
    %77 = tpu.matmul %75, %12, %cst_30 {dimension_numbers = #tpu.dot_dimension_numbers<[1], [0], [0], [1], [0, 0, 1, 1], [], []>} : vector<2x32xf32>, vector<32x128xf32>, vector<2x128xf32> -> vector<2x128xf32>
    %78 = vector.extract_strided_slice %16 {offsets = [4, 0], sizes = [2, 128], strides = [1, 1]} : vector<16x128xf32> to vector<2x128xf32>
    %79 = arith.addf %77, %78 : vector<2x128xf32>
    %80 = vector.extract_strided_slice %79 {offsets = [0, 0], sizes = [2, 32], strides = [1, 1]} : vector<2x128xf32> to vector<2x32xf32>
    %81 = arith.negf %80 : vector<2x32xf32>
    %82 = math.exp %81 : vector<2x32xf32>
    %cst_31 = arith.constant 1.000000e+00 : f32
    %83 = vector.broadcast %cst_31 : f32 to vector<2x32xf32>
    %84 = arith.addf %83, %82 : vector<2x32xf32>
    %85 = arith.divf %83, %84 : vector<2x32xf32>
    %86 = vector.extract_strided_slice %79 {offsets = [0, 32], sizes = [2, 32], strides = [1, 1]} : vector<2x128xf32> to vector<2x32xf32>
    %87 = arith.negf %86 : vector<2x32xf32>
    %88 = math.exp %87 : vector<2x32xf32>
    %cst_32 = arith.constant 1.000000e+00 : f32
    %89 = vector.broadcast %cst_32 : f32 to vector<2x32xf32>
    %90 = arith.addf %89, %88 : vector<2x32xf32>
    %91 = arith.divf %89, %90 : vector<2x32xf32>
    %92 = vector.extract_strided_slice %79 {offsets = [0, 64], sizes = [2, 32], strides = [1, 1]} : vector<2x128xf32> to vector<2x32xf32>
    %93 = math.tanh %92 : vector<2x32xf32>
    %94 = vector.extract_strided_slice %79 {offsets = [0, 96], sizes = [2, 32], strides = [1, 1]} : vector<2x128xf32> to vector<2x32xf32>
    %95 = arith.negf %94 : vector<2x32xf32>
    %96 = math.exp %95 : vector<2x32xf32>
    %cst_33 = arith.constant 1.000000e+00 : f32
    %97 = vector.broadcast %cst_33 : f32 to vector<2x32xf32>
    %98 = arith.addf %97, %96 : vector<2x32xf32>
    %99 = arith.divf %97, %98 : vector<2x32xf32>
    %100 = arith.mulf %91, %73 : vector<2x32xf32>
    %101 = arith.mulf %85, %93 : vector<2x32xf32>
    %102 = arith.addf %100, %101 : vector<2x32xf32>
    %103 = math.tanh %102 : vector<2x32xf32>
    %104 = arith.mulf %99, %103 : vector<2x32xf32>
    %c4 = arith.constant 4 : index
    %c0_34 = arith.constant 0 : index
    %105 = vector.load %arg14[%c4, %c0_34] : memref<16x32xf32, #tpu.memory_space<vmem>>, vector<2x32xf32>
    tpu.vector_store %arg14[%c4, %c0_34], %104 {strides = array<i32>} : memref<16x32xf32, #tpu.memory_space<vmem>>, vector<2x32xf32>,
    %cst_35 = arith.constant dense<0.000000e+00> : vector<2x128xf32>
    %106 = tpu.matmul %104, %12, %cst_35 {dimension_numbers = #tpu.dot_dimension_numbers<[1], [0], [0], [1], [0, 0, 1, 1], [], []>} : vector<2x32xf32>, vector<32x128xf32>, vector<2x128xf32> -> vector<2x128xf32>
    %107 = vector.extract_strided_slice %16 {offsets = [6, 0], sizes = [2, 128], strides = [1, 1]} : vector<16x128xf32> to vector<2x128xf32>
    %108 = arith.addf %106, %107 : vector<2x128xf32>
    %109 = vector.extract_strided_slice %108 {offsets = [0, 0], sizes = [2, 32], strides = [1, 1]} : vector<2x128xf32> to vector<2x32xf32>
    %110 = arith.negf %109 : vector<2x32xf32>
    %111 = math.exp %110 : vector<2x32xf32>
    %cst_36 = arith.constant 1.000000e+00 : f32
    %112 = vector.broadcast %cst_36 : f32 to vector<2x32xf32>
    %113 = arith.addf %112, %111 : vector<2x32xf32>
    %114 = arith.divf %112, %113 : vector<2x32xf32>
    %115 = vector.extract_strided_slice %108 {offsets = [0, 32], sizes = [2, 32], strides = [1, 1]} : vector<2x128xf32> to vector<2x32xf32>
    %116 = arith.negf %115 : vector<2x32xf32>
    %117 = math.exp %116 : vector<2x32xf32>
    %cst_37 = arith.constant 1.000000e+00 : f32
    %118 = vector.broadcast %cst_37 : f32 to vector<2x32xf32>
    %119 = arith.addf %118, %117 : vector<2x32xf32>
    %120 = arith.divf %118, %119 : vector<2x32xf32>
    %121 = vector.extract_strided_slice %108 {offsets = [0, 64], sizes = [2, 32], strides = [1, 1]} : vector<2x128xf32> to vector<2x32xf32>
    %122 = math.tanh %121 : vector<2x32xf32>
    %123 = vector.extract_strided_slice %108 {offsets = [0, 96], sizes = [2, 32], strides = [1, 1]} : vector<2x128xf32> to vector<2x32xf32>
    %124 = arith.negf %123 : vector<2x32xf32>
    %125 = math.exp %124 : vector<2x32xf32>
    %cst_38 = arith.constant 1.000000e+00 : f32
    %126 = vector.broadcast %cst_38 : f32 to vector<2x32xf32>
    %127 = arith.addf %126, %125 : vector<2x32xf32>
    %128 = arith.divf %126, %127 : vector<2x32xf32>
    %129 = arith.mulf %120, %102 : vector<2x32xf32>
    %130 = arith.mulf %114, %122 : vector<2x32xf32>
    %131 = arith.addf %129, %130 : vector<2x32xf32>
    %132 = math.tanh %131 : vector<2x32xf32>
    %133 = arith.mulf %128, %132 : vector<2x32xf32>
    %c6 = arith.constant 6 : index
    %c0_39 = arith.constant 0 : index
    %134 = vector.load %arg14[%c6, %c0_39] : memref<16x32xf32, #tpu.memory_space<vmem>>, vector<2x32xf32>
    tpu.vector_store %arg14[%c6, %c0_39], %133 {strides = array<i32>} : memref<16x32xf32, #tpu.memory_space<vmem>>, vector<2x32xf32>,
    %cst_40 = arith.constant dense<0.000000e+00> : vector<2x128xf32>
    %135 = tpu.matmul %133, %12, %cst_40 {dimension_numbers = #tpu.dot_dimension_numbers<[1], [0], [0], [1], [0, 0, 1, 1], [], []>} : vector<2x32xf32>, vector<32x128xf32>, vector<2x128xf32> -> vector<2x128xf32>
    %136 = vector.extract_strided_slice %16 {offsets = [8, 0], sizes = [2, 128], strides = [1, 1]} : vector<16x128xf32> to vector<2x128xf32>
    %137 = arith.addf %135, %136 : vector<2x128xf32>
    %138 = vector.extract_strided_slice %137 {offsets = [0, 0], sizes = [2, 32], strides = [1, 1]} : vector<2x128xf32> to vector<2x32xf32>
    %139 = arith.negf %138 : vector<2x32xf32>
    %140 = math.exp %139 : vector<2x32xf32>
    %cst_41 = arith.constant 1.000000e+00 : f32
    %141 = vector.broadcast %cst_41 : f32 to vector<2x32xf32>
    %142 = arith.addf %141, %140 : vector<2x32xf32>
    %143 = arith.divf %141, %142 : vector<2x32xf32>
    %144 = vector.extract_strided_slice %137 {offsets = [0, 32], sizes = [2, 32], strides = [1, 1]} : vector<2x128xf32> to vector<2x32xf32>
    %145 = arith.negf %144 : vector<2x32xf32>
    %146 = math.exp %145 : vector<2x32xf32>
    %cst_42 = arith.constant 1.000000e+00 : f32
    %147 = vector.broadcast %cst_42 : f32 to vector<2x32xf32>
    %148 = arith.addf %147, %146 : vector<2x32xf32>
    %149 = arith.divf %147, %148 : vector<2x32xf32>
    %150 = vector.extract_strided_slice %137 {offsets = [0, 64], sizes = [2, 32], strides = [1, 1]} : vector<2x128xf32> to vector<2x32xf32>
    %151 = math.tanh %150 : vector<2x32xf32>
    %152 = vector.extract_strided_slice %137 {offsets = [0, 96], sizes = [2, 32], strides = [1, 1]} : vector<2x128xf32> to vector<2x32xf32>
    %153 = arith.negf %152 : vector<2x32xf32>
    %154 = math.exp %153 : vector<2x32xf32>
    %cst_43 = arith.constant 1.000000e+00 : f32
    %155 = vector.broadcast %cst_43 : f32 to vector<2x32xf32>
    %156 = arith.addf %155, %154 : vector<2x32xf32>
    %157 = arith.divf %155, %156 : vector<2x32xf32>
    %158 = arith.mulf %149, %131 : vector<2x32xf32>
    %159 = arith.mulf %143, %151 : vector<2x32xf32>
    %160 = arith.addf %158, %159 : vector<2x32xf32>
    %161 = math.tanh %160 : vector<2x32xf32>
    %162 = arith.mulf %157, %161 : vector<2x32xf32>
    %c8 = arith.constant 8 : index
    %c0_44 = arith.constant 0 : index
    %163 = vector.load %arg14[%c8, %c0_44] : memref<16x32xf32, #tpu.memory_space<vmem>>, vector<2x32xf32>
    tpu.vector_store %arg14[%c8, %c0_44], %162 {strides = array<i32>} : memref<16x32xf32, #tpu.memory_space<vmem>>, vector<2x32xf32>,
    %cst_45 = arith.constant dense<0.000000e+00> : vector<2x128xf32>
    %164 = tpu.matmul %162, %12, %cst_45 {dimension_numbers = #tpu.dot_dimension_numbers<[1], [0], [0], [1], [0, 0, 1, 1], [], []>} : vector<2x32xf32>, vector<32x128xf32>, vector<2x128xf32> -> vector<2x128xf32>
    %165 = vector.extract_strided_slice %16 {offsets = [10, 0], sizes = [2, 128], strides = [1, 1]} : vector<16x128xf32> to vector<2x128xf32>
    %166 = arith.addf %164, %165 : vector<2x128xf32>
    %167 = vector.extract_strided_slice %166 {offsets = [0, 0], sizes = [2, 32], strides = [1, 1]} : vector<2x128xf32> to vector<2x32xf32>
    %168 = arith.negf %167 : vector<2x32xf32>
    %169 = math.exp %168 : vector<2x32xf32>
    %cst_46 = arith.constant 1.000000e+00 : f32
    %170 = vector.broadcast %cst_46 : f32 to vector<2x32xf32>
    %171 = arith.addf %170, %169 : vector<2x32xf32>
    %172 = arith.divf %170, %171 : vector<2x32xf32>
    %173 = vector.extract_strided_slice %166 {offsets = [0, 32], sizes = [2, 32], strides = [1, 1]} : vector<2x128xf32> to vector<2x32xf32>
    %174 = arith.negf %173 : vector<2x32xf32>
    %175 = math.exp %174 : vector<2x32xf32>
    %cst_47 = arith.constant 1.000000e+00 : f32
    %176 = vector.broadcast %cst_47 : f32 to vector<2x32xf32>
    %177 = arith.addf %176, %175 : vector<2x32xf32>
    %178 = arith.divf %176, %177 : vector<2x32xf32>
    %179 = vector.extract_strided_slice %166 {offsets = [0, 64], sizes = [2, 32], strides = [1, 1]} : vector<2x128xf32> to vector<2x32xf32>
    %180 = math.tanh %179 : vector<2x32xf32>
    %181 = vector.extract_strided_slice %166 {offsets = [0, 96], sizes = [2, 32], strides = [1, 1]} : vector<2x128xf32> to vector<2x32xf32>
    %182 = arith.negf %181 : vector<2x32xf32>
    %183 = math.exp %182 : vector<2x32xf32>
    %cst_48 = arith.constant 1.000000e+00 : f32
    %184 = vector.broadcast %cst_48 : f32 to vector<2x32xf32>
    %185 = arith.addf %184, %183 : vector<2x32xf32>
    %186 = arith.divf %184, %185 : vector<2x32xf32>
    %187 = arith.mulf %178, %160 : vector<2x32xf32>
    %188 = arith.mulf %172, %180 : vector<2x32xf32>
    %189 = arith.addf %187, %188 : vector<2x32xf32>
    %190 = math.tanh %189 : vector<2x32xf32>
    %191 = arith.mulf %186, %190 : vector<2x32xf32>
    %c10 = arith.constant 10 : index
    %c0_49 = arith.constant 0 : index
    %192 = vector.load %arg14[%c10, %c0_49] : memref<16x32xf32, #tpu.memory_space<vmem>>, vector<2x32xf32>
    tpu.vector_store %arg14[%c10, %c0_49], %191 {strides = array<i32>} : memref<16x32xf32, #tpu.memory_space<vmem>>, vector<2x32xf32>,
    %cst_50 = arith.constant dense<0.000000e+00> : vector<2x128xf32>
    %193 = tpu.matmul %191, %12, %cst_50 {dimension_numbers = #tpu.dot_dimension_numbers<[1], [0], [0], [1], [0, 0, 1, 1], [], []>} : vector<2x32xf32>, vector<32x128xf32>, vector<2x128xf32> -> vector<2x128xf32>
    %194 = vector.extract_strided_slice %16 {offsets = [12, 0], sizes = [2, 128], strides = [1, 1]} : vector<16x128xf32> to vector<2x128xf32>
    %195 = arith.addf %193, %194 : vector<2x128xf32>
    %196 = vector.extract_strided_slice %195 {offsets = [0, 0], sizes = [2, 32], strides = [1, 1]} : vector<2x128xf32> to vector<2x32xf32>
    %197 = arith.negf %196 : vector<2x32xf32>
    %198 = math.exp %197 : vector<2x32xf32>
    %cst_51 = arith.constant 1.000000e+00 : f32
    %199 = vector.broadcast %cst_51 : f32 to vector<2x32xf32>
    %200 = arith.addf %199, %198 : vector<2x32xf32>
    %201 = arith.divf %199, %200 : vector<2x32xf32>
    %202 = vector.extract_strided_slice %195 {offsets = [0, 32], sizes = [2, 32], strides = [1, 1]} : vector<2x128xf32> to vector<2x32xf32>
    %203 = arith.negf %202 : vector<2x32xf32>
    %204 = math.exp %203 : vector<2x32xf32>
    %cst_52 = arith.constant 1.000000e+00 : f32
    %205 = vector.broadcast %cst_52 : f32 to vector<2x32xf32>
    %206 = arith.addf %205, %204 : vector<2x32xf32>
    %207 = arith.divf %205, %206 : vector<2x32xf32>
    %208 = vector.extract_strided_slice %195 {offsets = [0, 64], sizes = [2, 32], strides = [1, 1]} : vector<2x128xf32> to vector<2x32xf32>
    %209 = math.tanh %208 : vector<2x32xf32>
    %210 = vector.extract_strided_slice %195 {offsets = [0, 96], sizes = [2, 32], strides = [1, 1]} : vector<2x128xf32> to vector<2x32xf32>
    %211 = arith.negf %210 : vector<2x32xf32>
    %212 = math.exp %211 : vector<2x32xf32>
    %cst_53 = arith.constant 1.000000e+00 : f32
    %213 = vector.broadcast %cst_53 : f32 to vector<2x32xf32>
    %214 = arith.addf %213, %212 : vector<2x32xf32>
    %215 = arith.divf %213, %214 : vector<2x32xf32>
    %216 = arith.mulf %207, %189 : vector<2x32xf32>
    %217 = arith.mulf %201, %209 : vector<2x32xf32>
    %218 = arith.addf %216, %217 : vector<2x32xf32>
    %219 = math.tanh %218 : vector<2x32xf32>
    %220 = arith.mulf %215, %219 : vector<2x32xf32>
    %c12 = arith.constant 12 : index
    %c0_54 = arith.constant 0 : index
    %221 = vector.load %arg14[%c12, %c0_54] : memref<16x32xf32, #tpu.memory_space<vmem>>, vector<2x32xf32>
    tpu.vector_store %arg14[%c12, %c0_54], %220 {strides = array<i32>} : memref<16x32xf32, #tpu.memory_space<vmem>>, vector<2x32xf32>,
    %cst_55 = arith.constant dense<0.000000e+00> : vector<2x128xf32>
    %222 = tpu.matmul %220, %12, %cst_55 {dimension_numbers = #tpu.dot_dimension_numbers<[1], [0], [0], [1], [0, 0, 1, 1], [], []>} : vector<2x32xf32>, vector<32x128xf32>, vector<2x128xf32> -> vector<2x128xf32>
    %223 = vector.extract_strided_slice %16 {offsets = [14, 0], sizes = [2, 128], strides = [1, 1]} : vector<16x128xf32> to vector<2x128xf32>
    %224 = arith.addf %222, %223 : vector<2x128xf32>
    %225 = vector.extract_strided_slice %224 {offsets = [0, 0], sizes = [2, 32], strides = [1, 1]} : vector<2x128xf32> to vector<2x32xf32>
    %226 = arith.negf %225 : vector<2x32xf32>
    %227 = math.exp %226 : vector<2x32xf32>
    %cst_56 = arith.constant 1.000000e+00 : f32
    %228 = vector.broadcast %cst_56 : f32 to vector<2x32xf32>
    %229 = arith.addf %228, %227 : vector<2x32xf32>
    %230 = arith.divf %228, %229 : vector<2x32xf32>
    %231 = vector.extract_strided_slice %224 {offsets = [0, 32], sizes = [2, 32], strides = [1, 1]} : vector<2x128xf32> to vector<2x32xf32>
    %232 = arith.negf %231 : vector<2x32xf32>
    %233 = math.exp %232 : vector<2x32xf32>
    %cst_57 = arith.constant 1.000000e+00 : f32
    %234 = vector.broadcast %cst_57 : f32 to vector<2x32xf32>
    %235 = arith.addf %234, %233 : vector<2x32xf32>
    %236 = arith.divf %234, %235 : vector<2x32xf32>
    %237 = vector.extract_strided_slice %224 {offsets = [0, 64], sizes = [2, 32], strides = [1, 1]} : vector<2x128xf32> to vector<2x32xf32>
    %238 = math.tanh %237 : vector<2x32xf32>
    %239 = vector.extract_strided_slice %224 {offsets = [0, 96], sizes = [2, 32], strides = [1, 1]} : vector<2x128xf32> to vector<2x32xf32>
    %240 = arith.negf %239 : vector<2x32xf32>
    %241 = math.exp %240 : vector<2x32xf32>
    %cst_58 = arith.constant 1.000000e+00 : f32
    %242 = vector.broadcast %cst_58 : f32 to vector<2x32xf32>
    %243 = arith.addf %242, %241 : vector<2x32xf32>
    %244 = arith.divf %242, %243 : vector<2x32xf32>
    %245 = arith.mulf %236, %218 : vector<2x32xf32>
    %246 = arith.mulf %230, %238 : vector<2x32xf32>
    %247 = arith.addf %245, %246 : vector<2x32xf32>
    %248 = math.tanh %247 : vector<2x32xf32>
    %249 = arith.mulf %244, %248 : vector<2x32xf32>
    %c14 = arith.constant 14 : index
    %c0_59 = arith.constant 0 : index
    %250 = vector.load %arg14[%c14, %c0_59] : memref<16x32xf32, #tpu.memory_space<vmem>>, vector<2x32xf32>
    tpu.vector_store %arg14[%c14, %c0_59], %249 {strides = array<i32>} : memref<16x32xf32, #tpu.memory_space<vmem>>, vector<2x32xf32>,
    %c0_60 = arith.constant 0 : index
    %c0_61 = arith.constant 0 : index
    %251 = vector.load %arg14[%c0_60, %c0_61] : memref<16x32xf32, #tpu.memory_space<vmem>>, vector<16x32xf32>
    %c0_62 = arith.constant 0 : index
    %c0_63 = arith.constant 0 : index
    %252 = vector.load %arg8[%c0_62, %c0_63] : memref<32x128xf32, #tpu.memory_space<vmem>>, vector<32x128xf32>
    %c0_64 = arith.constant 0 : index
    %c0_65 = arith.constant 0 : index
    %253 = vector.load %arg9[%c0_64, %c0_65] : memref<32x128xf32, #tpu.memory_space<vmem>>, vector<32x128xf32>
    %c0_66 = arith.constant 0 : index
    %c0_67 = arith.constant 0 : index
    %254 = vector.load %arg10[%c0_66, %c0_67] : memref<1x128xf32, #tpu.memory_space<vmem>>, vector<1x128xf32>
    %cst_68 = arith.constant dense<0.000000e+00> : vector<16x128xf32>
    %255 = tpu.matmul %251, %252, %cst_68 {dimension_numbers = #tpu.dot_dimension_numbers<[1], [0], [0], [1], [0, 0, 1, 1], [], []>} : vector<16x32xf32>, vector<32x128xf32>, vector<16x128xf32> -> vector<16x128xf32>
    %256 = vector.broadcast %254 : vector<1x128xf32> to vector<16x128xf32>
    %257 = arith.addf %255, %256 : vector<16x128xf32>
    %cst_69 = arith.constant 0.000000e+00 : f32
    %258 = vector.broadcast %cst_69 : f32 to vector<2x32xf32>
    %cst_70 = arith.constant 0.000000e+00 : f32
    %259 = vector.broadcast %cst_70 : f32 to vector<2x32xf32>
    %cst_71 = arith.constant dense<0.000000e+00> : vector<2x128xf32>
    %260 = tpu.matmul %258, %253, %cst_71 {dimension_numbers = #tpu.dot_dimension_numbers<[1], [0], [0], [1], [0, 0, 1, 1], [], []>} : vector<2x32xf32>, vector<32x128xf32>, vector<2x128xf32> -> vector<2x128xf32>
    %261 = vector.extract_strided_slice %257 {offsets = [0, 0], sizes = [2, 128], strides = [1, 1]} : vector<16x128xf32> to vector<2x128xf32>
    %262 = arith.addf %260, %261 : vector<2x128xf32>
    %263 = vector.extract_strided_slice %262 {offsets = [0, 0], sizes = [2, 32], strides = [1, 1]} : vector<2x128xf32> to vector<2x32xf32>
    %264 = arith.negf %263 : vector<2x32xf32>
    %265 = math.exp %264 : vector<2x32xf32>
    %cst_72 = arith.constant 1.000000e+00 : f32
    %266 = vector.broadcast %cst_72 : f32 to vector<2x32xf32>
    %267 = arith.addf %266, %265 : vector<2x32xf32>
    %268 = arith.divf %266, %267 : vector<2x32xf32>
    %269 = vector.extract_strided_slice %262 {offsets = [0, 32], sizes = [2, 32], strides = [1, 1]} : vector<2x128xf32> to vector<2x32xf32>
    %270 = arith.negf %269 : vector<2x32xf32>
    %271 = math.exp %270 : vector<2x32xf32>
    %cst_73 = arith.constant 1.000000e+00 : f32
    %272 = vector.broadcast %cst_73 : f32 to vector<2x32xf32>
    %273 = arith.addf %272, %271 : vector<2x32xf32>
    %274 = arith.divf %272, %273 : vector<2x32xf32>
    %275 = vector.extract_strided_slice %262 {offsets = [0, 64], sizes = [2, 32], strides = [1, 1]} : vector<2x128xf32> to vector<2x32xf32>
    %276 = math.tanh %275 : vector<2x32xf32>
    %277 = vector.extract_strided_slice %262 {offsets = [0, 96], sizes = [2, 32], strides = [1, 1]} : vector<2x128xf32> to vector<2x32xf32>
    %278 = arith.negf %277 : vector<2x32xf32>
    %279 = math.exp %278 : vector<2x32xf32>
    %cst_74 = arith.constant 1.000000e+00 : f32
    %280 = vector.broadcast %cst_74 : f32 to vector<2x32xf32>
    %281 = arith.addf %280, %279 : vector<2x32xf32>
    %282 = arith.divf %280, %281 : vector<2x32xf32>
    %283 = arith.mulf %274, %259 : vector<2x32xf32>
    %284 = arith.mulf %268, %276 : vector<2x32xf32>
    %285 = arith.addf %283, %284 : vector<2x32xf32>
    %286 = math.tanh %285 : vector<2x32xf32>
    %287 = arith.mulf %282, %286 : vector<2x32xf32>
    %c0_75 = arith.constant 0 : index
    %c0_76 = arith.constant 0 : index
    %288 = vector.load %arg14[%c0_75, %c0_76] : memref<16x32xf32, #tpu.memory_space<vmem>>, vector<2x32xf32>
    tpu.vector_store %arg14[%c0_75, %c0_76], %287 {strides = array<i32>} : memref<16x32xf32, #tpu.memory_space<vmem>>, vector<2x32xf32>,
    %cst_77 = arith.constant dense<0.000000e+00> : vector<2x128xf32>
    %289 = tpu.matmul %287, %253, %cst_77 {dimension_numbers = #tpu.dot_dimension_numbers<[1], [0], [0], [1], [0, 0, 1, 1], [], []>} : vector<2x32xf32>, vector<32x128xf32>, vector<2x128xf32> -> vector<2x128xf32>
    %290 = vector.extract_strided_slice %257 {offsets = [2, 0], sizes = [2, 128], strides = [1, 1]} : vector<16x128xf32> to vector<2x128xf32>
    %291 = arith.addf %289, %290 : vector<2x128xf32>
    %292 = vector.extract_strided_slice %291 {offsets = [0, 0], sizes = [2, 32], strides = [1, 1]} : vector<2x128xf32> to vector<2x32xf32>
    %293 = arith.negf %292 : vector<2x32xf32>
    %294 = math.exp %293 : vector<2x32xf32>
    %cst_78 = arith.constant 1.000000e+00 : f32
    %295 = vector.broadcast %cst_78 : f32 to vector<2x32xf32>
    %296 = arith.addf %295, %294 : vector<2x32xf32>
    %297 = arith.divf %295, %296 : vector<2x32xf32>
    %298 = vector.extract_strided_slice %291 {offsets = [0, 32], sizes = [2, 32], strides = [1, 1]} : vector<2x128xf32> to vector<2x32xf32>
    %299 = arith.negf %298 : vector<2x32xf32>
    %300 = math.exp %299 : vector<2x32xf32>
    %cst_79 = arith.constant 1.000000e+00 : f32
    %301 = vector.broadcast %cst_79 : f32 to vector<2x32xf32>
    %302 = arith.addf %301, %300 : vector<2x32xf32>
    %303 = arith.divf %301, %302 : vector<2x32xf32>
    %304 = vector.extract_strided_slice %291 {offsets = [0, 64], sizes = [2, 32], strides = [1, 1]} : vector<2x128xf32> to vector<2x32xf32>
    %305 = math.tanh %304 : vector<2x32xf32>
    %306 = vector.extract_strided_slice %291 {offsets = [0, 96], sizes = [2, 32], strides = [1, 1]} : vector<2x128xf32> to vector<2x32xf32>
    %307 = arith.negf %306 : vector<2x32xf32>
    %308 = math.exp %307 : vector<2x32xf32>
    %cst_80 = arith.constant 1.000000e+00 : f32
    %309 = vector.broadcast %cst_80 : f32 to vector<2x32xf32>
    %310 = arith.addf %309, %308 : vector<2x32xf32>
    %311 = arith.divf %309, %310 : vector<2x32xf32>
    %312 = arith.mulf %303, %285 : vector<2x32xf32>
    %313 = arith.mulf %297, %305 : vector<2x32xf32>
    %314 = arith.addf %312, %313 : vector<2x32xf32>
    %315 = math.tanh %314 : vector<2x32xf32>
    %316 = arith.mulf %311, %315 : vector<2x32xf32>
    %c2_81 = arith.constant 2 : index
    %c0_82 = arith.constant 0 : index
    %317 = vector.load %arg14[%c2_81, %c0_82] : memref<16x32xf32, #tpu.memory_space<vmem>>, vector<2x32xf32>
    tpu.vector_store %arg14[%c2_81, %c0_82], %316 {strides = array<i32>} : memref<16x32xf32, #tpu.memory_space<vmem>>, vector<2x32xf32>,
    %cst_83 = arith.constant dense<0.000000e+00> : vector<2x128xf32>
    %318 = tpu.matmul %316, %253, %cst_83 {dimension_numbers = #tpu.dot_dimension_numbers<[1], [0], [0], [1], [0, 0, 1, 1], [], []>} : vector<2x32xf32>, vector<32x128xf32>, vector<2x128xf32> -> vector<2x128xf32>
    %319 = vector.extract_strided_slice %257 {offsets = [4, 0], sizes = [2, 128], strides = [1, 1]} : vector<16x128xf32> to vector<2x128xf32>
    %320 = arith.addf %318, %319 : vector<2x128xf32>
    %321 = vector.extract_strided_slice %320 {offsets = [0, 0], sizes = [2, 32], strides = [1, 1]} : vector<2x128xf32> to vector<2x32xf32>
    %322 = arith.negf %321 : vector<2x32xf32>
    %323 = math.exp %322 : vector<2x32xf32>
    %cst_84 = arith.constant 1.000000e+00 : f32
    %324 = vector.broadcast %cst_84 : f32 to vector<2x32xf32>
    %325 = arith.addf %324, %323 : vector<2x32xf32>
    %326 = arith.divf %324, %325 : vector<2x32xf32>
    %327 = vector.extract_strided_slice %320 {offsets = [0, 32], sizes = [2, 32], strides = [1, 1]} : vector<2x128xf32> to vector<2x32xf32>
    %328 = arith.negf %327 : vector<2x32xf32>
    %329 = math.exp %328 : vector<2x32xf32>
    %cst_85 = arith.constant 1.000000e+00 : f32
    %330 = vector.broadcast %cst_85 : f32 to vector<2x32xf32>
    %331 = arith.addf %330, %329 : vector<2x32xf32>
    %332 = arith.divf %330, %331 : vector<2x32xf32>
    %333 = vector.extract_strided_slice %320 {offsets = [0, 64], sizes = [2, 32], strides = [1, 1]} : vector<2x128xf32> to vector<2x32xf32>
    %334 = math.tanh %333 : vector<2x32xf32>
    %335 = vector.extract_strided_slice %320 {offsets = [0, 96], sizes = [2, 32], strides = [1, 1]} : vector<2x128xf32> to vector<2x32xf32>
    %336 = arith.negf %335 : vector<2x32xf32>
    %337 = math.exp %336 : vector<2x32xf32>
    %cst_86 = arith.constant 1.000000e+00 : f32
    %338 = vector.broadcast %cst_86 : f32 to vector<2x32xf32>
    %339 = arith.addf %338, %337 : vector<2x32xf32>
    %340 = arith.divf %338, %339 : vector<2x32xf32>
    %341 = arith.mulf %332, %314 : vector<2x32xf32>
    %342 = arith.mulf %326, %334 : vector<2x32xf32>
    %343 = arith.addf %341, %342 : vector<2x32xf32>
    %344 = math.tanh %343 : vector<2x32xf32>
    %345 = arith.mulf %340, %344 : vector<2x32xf32>
    %c4_87 = arith.constant 4 : index
    %c0_88 = arith.constant 0 : index
    %346 = vector.load %arg14[%c4_87, %c0_88] : memref<16x32xf32, #tpu.memory_space<vmem>>, vector<2x32xf32>
    tpu.vector_store %arg14[%c4_87, %c0_88], %345 {strides = array<i32>} : memref<16x32xf32, #tpu.memory_space<vmem>>, vector<2x32xf32>,
    %cst_89 = arith.constant dense<0.000000e+00> : vector<2x128xf32>
    %347 = tpu.matmul %345, %253, %cst_89 {dimension_numbers = #tpu.dot_dimension_numbers<[1], [0], [0], [1], [0, 0, 1, 1], [], []>} : vector<2x32xf32>, vector<32x128xf32>, vector<2x128xf32> -> vector<2x128xf32>
    %348 = vector.extract_strided_slice %257 {offsets = [6, 0], sizes = [2, 128], strides = [1, 1]} : vector<16x128xf32> to vector<2x128xf32>
    %349 = arith.addf %347, %348 : vector<2x128xf32>
    %350 = vector.extract_strided_slice %349 {offsets = [0, 0], sizes = [2, 32], strides = [1, 1]} : vector<2x128xf32> to vector<2x32xf32>
    %351 = arith.negf %350 : vector<2x32xf32>
    %352 = math.exp %351 : vector<2x32xf32>
    %cst_90 = arith.constant 1.000000e+00 : f32
    %353 = vector.broadcast %cst_90 : f32 to vector<2x32xf32>
    %354 = arith.addf %353, %352 : vector<2x32xf32>
    %355 = arith.divf %353, %354 : vector<2x32xf32>
    %356 = vector.extract_strided_slice %349 {offsets = [0, 32], sizes = [2, 32], strides = [1, 1]} : vector<2x128xf32> to vector<2x32xf32>
    %357 = arith.negf %356 : vector<2x32xf32>
    %358 = math.exp %357 : vector<2x32xf32>
    %cst_91 = arith.constant 1.000000e+00 : f32
    %359 = vector.broadcast %cst_91 : f32 to vector<2x32xf32>
    %360 = arith.addf %359, %358 : vector<2x32xf32>
    %361 = arith.divf %359, %360 : vector<2x32xf32>
    %362 = vector.extract_strided_slice %349 {offsets = [0, 64], sizes = [2, 32], strides = [1, 1]} : vector<2x128xf32> to vector<2x32xf32>
    %363 = math.tanh %362 : vector<2x32xf32>
    %364 = vector.extract_strided_slice %349 {offsets = [0, 96], sizes = [2, 32], strides = [1, 1]} : vector<2x128xf32> to vector<2x32xf32>
    %365 = arith.negf %364 : vector<2x32xf32>
    %366 = math.exp %365 : vector<2x32xf32>
    %cst_92 = arith.constant 1.000000e+00 : f32
    %367 = vector.broadcast %cst_92 : f32 to vector<2x32xf32>
    %368 = arith.addf %367, %366 : vector<2x32xf32>
    %369 = arith.divf %367, %368 : vector<2x32xf32>
    %370 = arith.mulf %361, %343 : vector<2x32xf32>
    %371 = arith.mulf %355, %363 : vector<2x32xf32>
    %372 = arith.addf %370, %371 : vector<2x32xf32>
    %373 = math.tanh %372 : vector<2x32xf32>
    %374 = arith.mulf %369, %373 : vector<2x32xf32>
    %c6_93 = arith.constant 6 : index
    %c0_94 = arith.constant 0 : index
    %375 = vector.load %arg14[%c6_93, %c0_94] : memref<16x32xf32, #tpu.memory_space<vmem>>, vector<2x32xf32>
    tpu.vector_store %arg14[%c6_93, %c0_94], %374 {strides = array<i32>} : memref<16x32xf32, #tpu.memory_space<vmem>>, vector<2x32xf32>,
    %cst_95 = arith.constant dense<0.000000e+00> : vector<2x128xf32>
    %376 = tpu.matmul %374, %253, %cst_95 {dimension_numbers = #tpu.dot_dimension_numbers<[1], [0], [0], [1], [0, 0, 1, 1], [], []>} : vector<2x32xf32>, vector<32x128xf32>, vector<2x128xf32> -> vector<2x128xf32>
    %377 = vector.extract_strided_slice %257 {offsets = [8, 0], sizes = [2, 128], strides = [1, 1]} : vector<16x128xf32> to vector<2x128xf32>
    %378 = arith.addf %376, %377 : vector<2x128xf32>
    %379 = vector.extract_strided_slice %378 {offsets = [0, 0], sizes = [2, 32], strides = [1, 1]} : vector<2x128xf32> to vector<2x32xf32>
    %380 = arith.negf %379 : vector<2x32xf32>
    %381 = math.exp %380 : vector<2x32xf32>
    %cst_96 = arith.constant 1.000000e+00 : f32
    %382 = vector.broadcast %cst_96 : f32 to vector<2x32xf32>
    %383 = arith.addf %382, %381 : vector<2x32xf32>
    %384 = arith.divf %382, %383 : vector<2x32xf32>
    %385 = vector.extract_strided_slice %378 {offsets = [0, 32], sizes = [2, 32], strides = [1, 1]} : vector<2x128xf32> to vector<2x32xf32>
    %386 = arith.negf %385 : vector<2x32xf32>
    %387 = math.exp %386 : vector<2x32xf32>
    %cst_97 = arith.constant 1.000000e+00 : f32
    %388 = vector.broadcast %cst_97 : f32 to vector<2x32xf32>
    %389 = arith.addf %388, %387 : vector<2x32xf32>
    %390 = arith.divf %388, %389 : vector<2x32xf32>
    %391 = vector.extract_strided_slice %378 {offsets = [0, 64], sizes = [2, 32], strides = [1, 1]} : vector<2x128xf32> to vector<2x32xf32>
    %392 = math.tanh %391 : vector<2x32xf32>
    %393 = vector.extract_strided_slice %378 {offsets = [0, 96], sizes = [2, 32], strides = [1, 1]} : vector<2x128xf32> to vector<2x32xf32>
    %394 = arith.negf %393 : vector<2x32xf32>
    %395 = math.exp %394 : vector<2x32xf32>
    %cst_98 = arith.constant 1.000000e+00 : f32
    %396 = vector.broadcast %cst_98 : f32 to vector<2x32xf32>
    %397 = arith.addf %396, %395 : vector<2x32xf32>
    %398 = arith.divf %396, %397 : vector<2x32xf32>
    %399 = arith.mulf %390, %372 : vector<2x32xf32>
    %400 = arith.mulf %384, %392 : vector<2x32xf32>
    %401 = arith.addf %399, %400 : vector<2x32xf32>
    %402 = math.tanh %401 : vector<2x32xf32>
    %403 = arith.mulf %398, %402 : vector<2x32xf32>
    %c8_99 = arith.constant 8 : index
    %c0_100 = arith.constant 0 : index
    %404 = vector.load %arg14[%c8_99, %c0_100] : memref<16x32xf32, #tpu.memory_space<vmem>>, vector<2x32xf32>
    tpu.vector_store %arg14[%c8_99, %c0_100], %403 {strides = array<i32>} : memref<16x32xf32, #tpu.memory_space<vmem>>, vector<2x32xf32>,
    %cst_101 = arith.constant dense<0.000000e+00> : vector<2x128xf32>
    %405 = tpu.matmul %403, %253, %cst_101 {dimension_numbers = #tpu.dot_dimension_numbers<[1], [0], [0], [1], [0, 0, 1, 1], [], []>} : vector<2x32xf32>, vector<32x128xf32>, vector<2x128xf32> -> vector<2x128xf32>
    %406 = vector.extract_strided_slice %257 {offsets = [10, 0], sizes = [2, 128], strides = [1, 1]} : vector<16x128xf32> to vector<2x128xf32>
    %407 = arith.addf %405, %406 : vector<2x128xf32>
    %408 = vector.extract_strided_slice %407 {offsets = [0, 0], sizes = [2, 32], strides = [1, 1]} : vector<2x128xf32> to vector<2x32xf32>
    %409 = arith.negf %408 : vector<2x32xf32>
    %410 = math.exp %409 : vector<2x32xf32>
    %cst_102 = arith.constant 1.000000e+00 : f32
    %411 = vector.broadcast %cst_102 : f32 to vector<2x32xf32>
    %412 = arith.addf %411, %410 : vector<2x32xf32>
    %413 = arith.divf %411, %412 : vector<2x32xf32>
    %414 = vector.extract_strided_slice %407 {offsets = [0, 32], sizes = [2, 32], strides = [1, 1]} : vector<2x128xf32> to vector<2x32xf32>
    %415 = arith.negf %414 : vector<2x32xf32>
    %416 = math.exp %415 : vector<2x32xf32>
    %cst_103 = arith.constant 1.000000e+00 : f32
    %417 = vector.broadcast %cst_103 : f32 to vector<2x32xf32>
    %418 = arith.addf %417, %416 : vector<2x32xf32>
    %419 = arith.divf %417, %418 : vector<2x32xf32>
    %420 = vector.extract_strided_slice %407 {offsets = [0, 64], sizes = [2, 32], strides = [1, 1]} : vector<2x128xf32> to vector<2x32xf32>
    %421 = math.tanh %420 : vector<2x32xf32>
    %422 = vector.extract_strided_slice %407 {offsets = [0, 96], sizes = [2, 32], strides = [1, 1]} : vector<2x128xf32> to vector<2x32xf32>
    %423 = arith.negf %422 : vector<2x32xf32>
    %424 = math.exp %423 : vector<2x32xf32>
    %cst_104 = arith.constant 1.000000e+00 : f32
    %425 = vector.broadcast %cst_104 : f32 to vector<2x32xf32>
    %426 = arith.addf %425, %424 : vector<2x32xf32>
    %427 = arith.divf %425, %426 : vector<2x32xf32>
    %428 = arith.mulf %419, %401 : vector<2x32xf32>
    %429 = arith.mulf %413, %421 : vector<2x32xf32>
    %430 = arith.addf %428, %429 : vector<2x32xf32>
    %431 = math.tanh %430 : vector<2x32xf32>
    %432 = arith.mulf %427, %431 : vector<2x32xf32>
    %c10_105 = arith.constant 10 : index
    %c0_106 = arith.constant 0 : index
    %433 = vector.load %arg14[%c10_105, %c0_106] : memref<16x32xf32, #tpu.memory_space<vmem>>, vector<2x32xf32>
    tpu.vector_store %arg14[%c10_105, %c0_106], %432 {strides = array<i32>} : memref<16x32xf32, #tpu.memory_space<vmem>>, vector<2x32xf32>,
    %cst_107 = arith.constant dense<0.000000e+00> : vector<2x128xf32>
    %434 = tpu.matmul %432, %253, %cst_107 {dimension_numbers = #tpu.dot_dimension_numbers<[1], [0], [0], [1], [0, 0, 1, 1], [], []>} : vector<2x32xf32>, vector<32x128xf32>, vector<2x128xf32> -> vector<2x128xf32>
    %435 = vector.extract_strided_slice %257 {offsets = [12, 0], sizes = [2, 128], strides = [1, 1]} : vector<16x128xf32> to vector<2x128xf32>
    %436 = arith.addf %434, %435 : vector<2x128xf32>
    %437 = vector.extract_strided_slice %436 {offsets = [0, 0], sizes = [2, 32], strides = [1, 1]} : vector<2x128xf32> to vector<2x32xf32>
    %438 = arith.negf %437 : vector<2x32xf32>
    %439 = math.exp %438 : vector<2x32xf32>
    %cst_108 = arith.constant 1.000000e+00 : f32
    %440 = vector.broadcast %cst_108 : f32 to vector<2x32xf32>
    %441 = arith.addf %440, %439 : vector<2x32xf32>
    %442 = arith.divf %440, %441 : vector<2x32xf32>
    %443 = vector.extract_strided_slice %436 {offsets = [0, 32], sizes = [2, 32], strides = [1, 1]} : vector<2x128xf32> to vector<2x32xf32>
    %444 = arith.negf %443 : vector<2x32xf32>
    %445 = math.exp %444 : vector<2x32xf32>
    %cst_109 = arith.constant 1.000000e+00 : f32
    %446 = vector.broadcast %cst_109 : f32 to vector<2x32xf32>
    %447 = arith.addf %446, %445 : vector<2x32xf32>
    %448 = arith.divf %446, %447 : vector<2x32xf32>
    %449 = vector.extract_strided_slice %436 {offsets = [0, 64], sizes = [2, 32], strides = [1, 1]} : vector<2x128xf32> to vector<2x32xf32>
    %450 = math.tanh %449 : vector<2x32xf32>
    %451 = vector.extract_strided_slice %436 {offsets = [0, 96], sizes = [2, 32], strides = [1, 1]} : vector<2x128xf32> to vector<2x32xf32>
    %452 = arith.negf %451 : vector<2x32xf32>
    %453 = math.exp %452 : vector<2x32xf32>
    %cst_110 = arith.constant 1.000000e+00 : f32
    %454 = vector.broadcast %cst_110 : f32 to vector<2x32xf32>
    %455 = arith.addf %454, %453 : vector<2x32xf32>
    %456 = arith.divf %454, %455 : vector<2x32xf32>
    %457 = arith.mulf %448, %430 : vector<2x32xf32>
    %458 = arith.mulf %442, %450 : vector<2x32xf32>
    %459 = arith.addf %457, %458 : vector<2x32xf32>
    %460 = math.tanh %459 : vector<2x32xf32>
    %461 = arith.mulf %456, %460 : vector<2x32xf32>
    %c12_111 = arith.constant 12 : index
    %c0_112 = arith.constant 0 : index
    %462 = vector.load %arg14[%c12_111, %c0_112] : memref<16x32xf32, #tpu.memory_space<vmem>>, vector<2x32xf32>
    tpu.vector_store %arg14[%c12_111, %c0_112], %461 {strides = array<i32>} : memref<16x32xf32, #tpu.memory_space<vmem>>, vector<2x32xf32>,
    %cst_113 = arith.constant dense<0.000000e+00> : vector<2x128xf32>
    %463 = tpu.matmul %461, %253, %cst_113 {dimension_numbers = #tpu.dot_dimension_numbers<[1], [0], [0], [1], [0, 0, 1, 1], [], []>} : vector<2x32xf32>, vector<32x128xf32>, vector<2x128xf32> -> vector<2x128xf32>
    %464 = vector.extract_strided_slice %257 {offsets = [14, 0], sizes = [2, 128], strides = [1, 1]} : vector<16x128xf32> to vector<2x128xf32>
    %465 = arith.addf %463, %464 : vector<2x128xf32>
    %466 = vector.extract_strided_slice %465 {offsets = [0, 0], sizes = [2, 32], strides = [1, 1]} : vector<2x128xf32> to vector<2x32xf32>
    %467 = arith.negf %466 : vector<2x32xf32>
    %468 = math.exp %467 : vector<2x32xf32>
    %cst_114 = arith.constant 1.000000e+00 : f32
    %469 = vector.broadcast %cst_114 : f32 to vector<2x32xf32>
    %470 = arith.addf %469, %468 : vector<2x32xf32>
    %471 = arith.divf %469, %470 : vector<2x32xf32>
    %472 = vector.extract_strided_slice %465 {offsets = [0, 32], sizes = [2, 32], strides = [1, 1]} : vector<2x128xf32> to vector<2x32xf32>
    %473 = arith.negf %472 : vector<2x32xf32>
    %474 = math.exp %473 : vector<2x32xf32>
    %cst_115 = arith.constant 1.000000e+00 : f32
    %475 = vector.broadcast %cst_115 : f32 to vector<2x32xf32>
    %476 = arith.addf %475, %474 : vector<2x32xf32>
    %477 = arith.divf %475, %476 : vector<2x32xf32>
    %478 = vector.extract_strided_slice %465 {offsets = [0, 64], sizes = [2, 32], strides = [1, 1]} : vector<2x128xf32> to vector<2x32xf32>
    %479 = math.tanh %478 : vector<2x32xf32>
    %480 = vector.extract_strided_slice %465 {offsets = [0, 96], sizes = [2, 32], strides = [1, 1]} : vector<2x128xf32> to vector<2x32xf32>
    %481 = arith.negf %480 : vector<2x32xf32>
    %482 = math.exp %481 : vector<2x32xf32>
    %cst_116 = arith.constant 1.000000e+00 : f32
    %483 = vector.broadcast %cst_116 : f32 to vector<2x32xf32>
    %484 = arith.addf %483, %482 : vector<2x32xf32>
    %485 = arith.divf %483, %484 : vector<2x32xf32>
    %486 = arith.mulf %477, %459 : vector<2x32xf32>
    %487 = arith.mulf %471, %479 : vector<2x32xf32>
    %488 = arith.addf %486, %487 : vector<2x32xf32>
    %489 = math.tanh %488 : vector<2x32xf32>
    %490 = arith.mulf %485, %489 : vector<2x32xf32>
    %c14_117 = arith.constant 14 : index
    %c0_118 = arith.constant 0 : index
    %491 = vector.load %arg14[%c14_117, %c0_118] : memref<16x32xf32, #tpu.memory_space<vmem>>, vector<2x32xf32>
    tpu.vector_store %arg14[%c14_117, %c0_118], %490 {strides = array<i32>} : memref<16x32xf32, #tpu.memory_space<vmem>>, vector<2x32xf32>,
    %c0_119 = arith.constant 0 : index
    %c0_120 = arith.constant 0 : index
    %492 = vector.load %arg14[%c0_119, %c0_120] : memref<16x32xf32, #tpu.memory_space<vmem>>, vector<16x32xf32>
    %c0_121 = arith.constant 0 : index
    %c0_122 = arith.constant 0 : index
    %493 = vector.load %arg11[%c0_121, %c0_122] : memref<32x128xf32, #tpu.memory_space<vmem>>, vector<32x128xf32>
    %cst_123 = arith.constant dense<0.000000e+00> : vector<16x128xf32>
    %494 = tpu.matmul %492, %493, %cst_123 {dimension_numbers = #tpu.dot_dimension_numbers<[1], [0], [0], [1], [0, 0, 1, 1], [], []>} : vector<16x32xf32>, vector<32x128xf32>, vector<16x128xf32> -> vector<16x128xf32>
    %c0_124 = arith.constant 0 : index
    %c0_125 = arith.constant 0 : index
    %495 = vector.load %arg12[%c0_124, %c0_125] : memref<1x128xf32, #tpu.memory_space<vmem>>, vector<1x128xf32>
    %496 = vector.broadcast %495 : vector<1x128xf32> to vector<16x128xf32>
    %497 = arith.addf %494, %496 : vector<16x128xf32>
    %c0_126 = arith.constant 0 : index
    %c0_127 = arith.constant 0 : index
    %498 = vector.load %arg13[%c0_126, %c0_127] : memref<16x128xf32, #tpu.memory_space<vmem>>, vector<16x128xf32>
    tpu.vector_store %arg13[%c0_126, %c0_127], %497 {strides = array<i32>} : memref<16x128xf32, #tpu.memory_space<vmem>>, vector<16x128xf32>,
    return
  }
}

</mosaic_0001>

<llo_original>
// kernel: caption_generator_forward.1
$region0: #{caption_generator_forward.1}
  #allocation0 [shape = 'u32[]', space=smem, size = 0x4, offset = 0x4, fixed_abs, tag = 'smem constant byte address 0x4 - core index']
  #allocation1 [shape = 'u32[144,128]{1,0:T(1,128)}', space=vmem, size = 0x12000, scoped, tag = 'internal scratch']
  #allocation2 [shape = 'f32[16,32]{1,0:T(8,128)}', space=vmem, size = 0x2000, scoped, tag = 'scratch operand']
  %s0 = inlined_call_operand.vmem [shape: f32[2,16], index: 0, kind: input, shape index: {}]
  %s1 = inlined_call_operand.vmem [shape: f32[16,16], index: 1, kind: input, shape index: {}]
  %s2 = inlined_call_operand.vmem [shape: f32[16,16], index: 2, kind: input, shape index: {}]
  %s3 = inlined_call_operand.vmem [shape: f32[16,16], index: 3, kind: input, shape index: {}]
  %s4 = inlined_call_operand.vmem [shape: f32[1,16], index: 4, kind: input, shape index: {}]
  %s5 = inlined_call_operand.vmem [shape: f32[16,128], index: 5, kind: input, shape index: {}]
  %s6 = inlined_call_operand.vmem [shape: f32[32,128], index: 6, kind: input, shape index: {}]
  %s7 = inlined_call_operand.vmem [shape: f32[1,128], index: 7, kind: input, shape index: {}]
  %s8 = inlined_call_operand.vmem [shape: f32[32,128], index: 8, kind: input, shape index: {}]
  %s9 = inlined_call_operand.vmem [shape: f32[32,128], index: 9, kind: input, shape index: {}]
  %s10 = inlined_call_operand.vmem [shape: f32[1,128], index: 10, kind: input, shape index: {}]
  %s11 = inlined_call_operand.vmem [shape: f32[32,128], index: 11, kind: input, shape index: {}]
  %s12 = inlined_call_operand.vmem [shape: f32[1,128], index: 12, kind: input, shape index: {}]
  %s13 = inlined_call_operand.vmem [shape: f32[16,128], index: 13, kind: output, shape index: {}]
  %s14 = sld [smem:[#allocation0]]
  $region62: #{caption_generator_forward.1} parent=0
    _
  %s16 = ssub.s32 1, %s14
  %s17 = scalar_select 0, %s16, %s14
  // Predicated region
  $region2: #{caption_generator_forward.1} parent=0 // pred_check
    _
  $region3: #{caption_generator_forward.1} parent=0 // pred_check_branch
    %19 = sbr.rel (0) target = $region5
  $region4: #{caption_generator_forward.1} parent=0 // pred_region
    _
  $region5: #{caption_generator_forward.1} parent=0 // pred_fallthru
    _
  // Predicated region
  $region6: #{caption_generator_forward.1} parent=0 // pred_check
    _
  $region7: #{caption_generator_forward.1} parent=0 // pred_check_branch
    %21 = sbr.rel (0) target = $region9
  $region8: #{caption_generator_forward.1} parent=0 // pred_region
    _
  $region9: #{caption_generator_forward.1} parent=0 // pred_fallthru
    _
  // Predicated region
  $region10: #{caption_generator_forward.1} parent=0 // pred_check
    _
  $region11: #{caption_generator_forward.1} parent=0 // pred_check_branch
    %23 = sbr.rel (0) target = $region13
  $region12: #{caption_generator_forward.1} parent=0 // pred_region
    _
  $region13: #{caption_generator_forward.1} parent=0 // pred_fallthru
    _
  // Predicated region
  $region14: #{caption_generator_forward.1} parent=0 // pred_check
    _
  $region15: #{caption_generator_forward.1} parent=0 // pred_check_branch
    %25 = sbr.rel (0) target = $region17
  $region16: #{caption_generator_forward.1} parent=0 // pred_region
    _
  $region17: #{caption_generator_forward.1} parent=0 // pred_fallthru
    _
  // Predicated region
  $region18: #{caption_generator_forward.1} parent=0 // pred_check
    _
  $region19: #{caption_generator_forward.1} parent=0 // pred_check_branch
    %27 = sbr.rel (0) target = $region21
  $region20: #{caption_generator_forward.1} parent=0 // pred_region
    _
  $region21: #{caption_generator_forward.1} parent=0 // pred_fallthru
    _
  // Predicated region
  $region22: #{caption_generator_forward.1} parent=0 // pred_check
    _
  $region23: #{caption_generator_forward.1} parent=0 // pred_check_branch
    %29 = sbr.rel (0) target = $region25
  $region24: #{caption_generator_forward.1} parent=0 // pred_region
    _
  $region25: #{caption_generator_forward.1} parent=0 // pred_fallthru
    _
  // Predicated region
  $region26: #{caption_generator_forward.1} parent=0 // pred_check
    _
  $region27: #{caption_generator_forward.1} parent=0 // pred_check_branch
    %31 = sbr.rel (0) target = $region29
  $region28: #{caption_generator_forward.1} parent=0 // pred_region
    _
  $region29: #{caption_generator_forward.1} parent=0 // pred_fallthru
    _
  // Predicated region
  $region30: #{caption_generator_forward.1} parent=0 // pred_check
    _
  $region31: #{caption_generator_forward.1} parent=0 // pred_check_branch
    %33 = sbr.rel (0) target = $region33
  $region32: #{caption_generator_forward.1} parent=0 // pred_region
    _
  $region33: #{caption_generator_forward.1} parent=0 // pred_fallthru
    _
  // Predicated region
  $region34: #{caption_generator_forward.1} parent=0 // pred_check
    _
  $region35: #{caption_generator_forward.1} parent=0 // pred_check_branch
    %35 = sbr.rel (0) target = $region37
  $region36: #{caption_generator_forward.1} parent=0 // pred_region
    _
  $region37: #{caption_generator_forward.1} parent=0 // pred_fallthru
    _
  // Predicated region
  $region38: #{caption_generator_forward.1} parent=0 // pred_check
    _
  $region39: #{caption_generator_forward.1} parent=0 // pred_check_branch
    %37 = sbr.rel (0) target = $region41
  $region40: #{caption_generator_forward.1} parent=0 // pred_region
    _
  $region41: #{caption_generator_forward.1} parent=0 // pred_fallthru
    _
  // Predicated region
  $region42: #{caption_generator_forward.1} parent=0 // pred_check
    _
  $region43: #{caption_generator_forward.1} parent=0 // pred_check_branch
    %39 = sbr.rel (0) target = $region45
  $region44: #{caption_generator_forward.1} parent=0 // pred_region
    _
  $region45: #{caption_generator_forward.1} parent=0 // pred_fallthru
    _
  // Predicated region
  $region46: #{caption_generator_forward.1} parent=0 // pred_check
    _
  $region47: #{caption_generator_forward.1} parent=0 // pred_check_branch
    %41 = sbr.rel (0) target = $region49
  $region48: #{caption_generator_forward.1} parent=0 // pred_region
    _
  $region49: #{caption_generator_forward.1} parent=0 // pred_fallthru
    _
  // Predicated region
  $region50: #{caption_generator_forward.1} parent=0 // pred_check
    _
  $region51: #{caption_generator_forward.1} parent=0 // pred_check_branch
    %43 = sbr.rel (0) target = $region53
  $region52: #{caption_generator_forward.1} parent=0 // pred_region
    _
  $region53: #{caption_generator_forward.1} parent=0 // pred_fallthru
    _
  %v44 = vld [vmem:[%s0] sm:$0x3]
  %v45 = vld [vmem:[%s2] sm:$0xff]
  %v46 = vld [vmem:[%s2 + $0x8] sm:$0xff]
  %vm47 = vcmask 130048
  %v49 = vsel %vm47, %v44, 0
  %51 = vmatprep.subr.mxu0 0.0
  %52 = vmatpush1.msra.mxu0 %v45
  %53 = vmatprep.subr.mxu0 0.0
  %54 = vmatpush1.msra.mxu0 %v46
  %55 = vmatprep.subr.mxu0 0.0
  %56 = vmatpush1.msra.mxu0 0.0
  %57 = vmatprep.subr.mxu0 0.0
  %58 = vmatpush1.msra.mxu0 0.0
  %59 = vmatprep.subr.mxu0 0.0
  %60 = vmatpush1.msra.mxu0 0.0
  %61 = vmatprep.subr.mxu0 0.0
  %62 = vmatpush1.msra.mxu0 0.0
  %63 = vmatprep.subr.mxu0 0.0
  %64 = vmatpush1.msra.mxu0 0.0
  %65 = vmatprep.subr.mxu0 0.0
  %66 = vmatpush1.msra.mxu0 0.0
  %67 = vmatprep.subr.mxu0 0.0
  %68 = vmatpush1.msra.mxu0 0.0
  %69 = vmatprep.subr.mxu0 0.0
  %70 = vmatpush1.msra.mxu0 0.0
  %71 = vmatprep.subr.mxu0 0.0
  %72 = vmatpush1.msra.mxu0 0.0
  %73 = vmatprep.subr.mxu0 0.0
  %74 = vmatpush1.msra.mxu0 0.0
  %75 = vmatprep.subr.mxu0 0.0
  %76 = vmatpush1.msra.mxu0 0.0
  %77 = vmatprep.subr.mxu0 0.0
  %78 = vmatpush1.msra.mxu0 0.0
  %79 = vmatprep.subr.mxu0 0.0
  %80 = vmatpush1.msra.mxu0 0.0
  %81 = vmatprep.subr.mxu0 0.0
  %82 = vmatpush1.msra.mxu0 0.0
  %83 = vmatprep.subr.mxu0 0.0
  %84 = vmatpush1.msra.mxu0 0.0
  %85 = vmatprep.subr.mxu0 0.0
  %86 = vmatpush1.msra.mxu0 0.0
  %87 = vmatprep.subr.mxu0 0.0
  %88 = vmatpush1.msra.mxu0 0.0
  %89 = vmatprep.subr.mxu0 0.0
  %90 = vmatpush1.msra.mxu0 0.0
  %91 = vmatprep.subr.mxu0 0.0
  %92 = vmatpush1.msra.mxu0 0.0
  %93 = vmatprep.subr.mxu0 0.0
  %94 = vmatpush1.msra.mxu0 0.0
  %95 = vmatprep.subr.mxu0 0.0
  %96 = vmatpush1.msra.mxu0 0.0
  %97 = vmatprep.subr.mxu0 0.0
  %98 = vmatpush1.msra.mxu0 0.0
  %99 = vmatprep.subr.mxu0 0.0
  %100 = vmatpush1.msra.mxu0 0.0
  %101 = vmatprep.subr.mxu0 0.0
  %102 = vmatpush1.msra.mxu0 0.0
  %103 = vmatprep.subr.mxu0 0.0
  %104 = vmatpush1.msra.mxu0 0.0
  %105 = vmatprep.subr.mxu0 0.0
  %106 = vmatpush1.msra.mxu0 0.0
  %107 = vmatprep.subr.mxu0 0.0
  %108 = vmatpush1.msra.mxu0 0.0
  %109 = vmatprep.subr.mxu0 0.0
  %110 = vmatpush1.msra.mxu0 0.0
  %111 = vmatprep.subr.mxu0 0.0
  %112 = vmatpush1.msra.mxu0 0.0
  %113 = vmatprep.subr.mxu0 0.0
  %114 = vmatpush1.msra.mxu0 0.0
  %115 = vmatprep.mubr.f32.mxu0 0.0
  %116 = vmatmul.mubr.f32.gmra.mrb[0].mxu0 %v49
  %v117 = vpop.f32.mrb[0].mxu0
  %v118 = vadd.f32 0.0, %v117
  %v119 = vpop.f32.mrb[0].mxu0
  %120 = vdwg.mxu0
  %v122 = vrot.slane %v118, 6
  %v124 = vrot.slane %v118, 4
  %v126 = vrot.slane %v118, 2
  %vm128 = vcmask 1041408
  %v129 = vsel %vm128, %v118, %v122
  %vm130 = vcmask 1043456
  %v131 = vsel %vm130, %v129, %v124
  %vm132 = vcmask 1045504
  %v133 = vsel %vm132, %v131, %v126
  %v134 = vld [vmem:[%s1] sm:$0xff]
  %v135 = vld [vmem:[%s1 + $0x8] sm:$0xff]
  %v136 = vld [vmem:[%s3] sm:$0xff]
  %v137 = vld [vmem:[%s3 + $0x8] sm:$0xff]
  %v138 = vld [vmem:[%s4] sm:$0x1]
  %v140 = vlaneseq
  %v141 = vshrl.u32 %v140, 7
  %v142 = vsub.s32 0, %v141
  %v143 = vrot.slane %v138, %v142
  %v146 = vsel %vm47, %v134, 0
  %v149 = vsel %vm47, %v135, 0
  %151 = vmatprep.subr.mxu0 0.0
  %152 = vmatpush1.msra.mxu0 %v136
  %153 = vmatprep.subr.mxu0 0.0
  %154 = vmatpush1.msra.mxu0 %v137
  %155 = vmatprep.subr.mxu0 0.0
  %156 = vmatpush1.msra.mxu0 0.0
  %157 = vmatprep.subr.mxu0 0.0
  %158 = vmatpush1.msra.mxu0 0.0
  %159 = vmatprep.subr.mxu0 0.0
  %160 = vmatpush1.msra.mxu0 0.0
  %161 = vmatprep.subr.mxu0 0.0
  %162 = vmatpush1.msra.mxu0 0.0
  %163 = vmatprep.subr.mxu0 0.0
  %164 = vmatpush1.msra.mxu0 0.0
  %165 = vmatprep.subr.mxu0 0.0
  %166 = vmatpush1.msra.mxu0 0.0
  %167 = vmatprep.subr.mxu0 0.0
  %168 = vmatpush1.msra.mxu0 0.0
  %169 = vmatprep.subr.mxu0 0.0
  %170 = vmatpush1.msra.mxu0 0.0
  %171 = vmatprep.subr.mxu0 0.0
  %172 = vmatpush1.msra.mxu0 0.0
  %173 = vmatprep.subr.mxu0 0.0
  %174 = vmatpush1.msra.mxu0 0.0
  %175 = vmatprep.subr.mxu0 0.0
  %176 = vmatpush1.msra.mxu0 0.0
  %177 = vmatprep.subr.mxu0 0.0
  %178 = vmatpush1.msra.mxu0 0.0
  %179 = vmatprep.subr.mxu0 0.0
  %180 = vmatpush1.msra.mxu0 0.0
  %181 = vmatprep.subr.mxu0 0.0
  %182 = vmatpush1.msra.mxu0 0.0
  %183 = vmatprep.subr.mxu0 0.0
  %184 = vmatpush1.msra.mxu0 0.0
  %185 = vmatprep.subr.mxu0 0.0
  %186 = vmatpush1.msra.mxu0 0.0
  %187 = vmatprep.subr.mxu0 0.0
  %188 = vmatpush1.msra.mxu0 0.0
  %189 = vmatprep.subr.mxu0 0.0
  %190 = vmatpush1.msra.mxu0 0.0
  %191 = vmatprep.subr.mxu0 0.0
  %192 = vmatpush1.msra.mxu0 0.0
  %193 = vmatprep.subr.mxu0 0.0
  %194 = vmatpush1.msra.mxu0 0.0
  %195 = vmatprep.subr.mxu0 0.0
  %196 = vmatpush1.msra.mxu0 0.0
  %197 = vmatprep.subr.mxu0 0.0
  %198 = vmatpush1.msra.mxu0 0.0
  %199 = vmatprep.subr.mxu0 0.0
  %200 = vmatpush1.msra.mxu0 0.0
  %201 = vmatprep.subr.mxu0 0.0
  %202 = vmatpush1.msra.mxu0 0.0
  %203 = vmatprep.subr.mxu0 0.0
  %204 = vmatpush1.msra.mxu0 0.0
  %205 = vmatprep.subr.mxu0 0.0
  %206 = vmatpush1.msra.mxu0 0.0
  %207 = vmatprep.subr.mxu0 0.0
  %208 = vmatpush1.msra.mxu0 0.0
  %209 = vmatprep.subr.mxu0 0.0
  %210 = vmatpush1.msra.mxu0 0.0
  %211 = vmatprep.subr.mxu0 0.0
  %212 = vmatpush1.msra.mxu0 0.0
  %213 = vmatprep.subr.mxu0 0.0
  %214 = vmatpush1.msra.mxu0 0.0
  %215 = vmatprep.mubr.f32.mxu0 0.0
  %216 = vmatmul.mubr.f32.gmra.mrb[0].mxu0 %v146
  %v217 = vpop.f32.mrb[0].mxu0
  %v218 = vadd.f32 %v143, %v217
  %v219 = vpop.f32.mrb[0].mxu0
  %220 = vmatprep.mubr.f32.mxu0 0.0
  %221 = vmatmul.mubr.f32.gmra.mrb[0].mxu0 %v149
  %v222 = vpop.f32.mrb[0].mxu0
  %v223 = vadd.f32 %v143, %v222
  %v224 = vpop.f32.mrb[0].mxu0
  %225 = vdwg.mxu0
  %v226 = vadd.f32 %v218, %v133
  %v227 = vadd.f32 %v223, %v133
  %v228 = vld [vmem:[%s5] sm:$0xff]
  %v229 = vld [vmem:[%s5 + $0x8] sm:$0xff]
  %v230 = vld [vmem:[%s6] sm:$0xff]
  %v231 = vld [vmem:[%s6 + $0x8] sm:$0xff]
  %v232 = vld [vmem:[%s6 + $0x10] sm:$0xff]
  %v233 = vld [vmem:[%s6 + $0x18] sm:$0xff]
  %v234 = vld [vmem:[%s7] sm:$0x1]
  %v236 = vlaneseq
  %v237 = vshrl.u32 %v236, 7
  %v238 = vsub.s32 0, %v237
  %v239 = vrot.slane %v234, %v238
  %v242 = vsel %vm47, %v226, 0
  %v245 = vsel %vm47, %v227, 0
  %247 = vmatprep.subr.mxu0 0.0
  %248 = vmatpush1.msra.mxu0 %v228
  %249 = vmatprep.subr.mxu0 0.0
  %250 = vmatpush1.msra.mxu0 %v229
  %251 = vmatprep.subr.mxu0 0.0
  %252 = vmatpush1.msra.mxu0 0.0
  %253 = vmatprep.subr.mxu0 0.0
  %254 = vmatpush1.msra.mxu0 0.0
  %255 = vmatprep.subr.mxu0 0.0
  %256 = vmatpush1.msra.mxu0 0.0
  %257 = vmatprep.subr.mxu0 0.0
  %258 = vmatpush1.msra.mxu0 0.0
  %259 = vmatprep.subr.mxu0 0.0
  %260 = vmatpush1.msra.mxu0 0.0
  %261 = vmatprep.subr.mxu0 0.0
  %262 = vmatpush1.msra.mxu0 0.0
  %263 = vmatprep.subr.mxu0 0.0
  %264 = vmatpush1.msra.mxu0 0.0
  %265 = vmatprep.subr.mxu0 0.0
  %266 = vmatpush1.msra.mxu0 0.0
  %267 = vmatprep.subr.mxu0 0.0
  %268 = vmatpush1.msra.mxu0 0.0
  %269 = vmatprep.subr.mxu0 0.0
  %270 = vmatpush1.msra.mxu0 0.0
  %271 = vmatprep.subr.mxu0 0.0
  %272 = vmatpush1.msra.mxu0 0.0
  %273 = vmatprep.subr.mxu0 0.0
  %274 = vmatpush1.msra.mxu0 0.0
  %275 = vmatprep.subr.mxu0 0.0
  %276 = vmatpush1.msra.mxu0 0.0
  %277 = vmatprep.subr.mxu0 0.0
  %278 = vmatpush1.msra.mxu0 0.0
  %279 = vmatprep.subr.mxu0 0.0
  %280 = vmatpush1.msra.mxu0 0.0
  %281 = vmatprep.subr.mxu0 0.0
  %282 = vmatpush1.msra.mxu0 0.0
  %283 = vmatprep.subr.mxu0 0.0
  %284 = vmatpush1.msra.mxu0 0.0
  %285 = vmatprep.subr.mxu0 0.0
  %286 = vmatpush1.msra.mxu0 0.0
  %287 = vmatprep.subr.mxu0 0.0
  %288 = vmatpush1.msra.mxu0 0.0
  %289 = vmatprep.subr.mxu0 0.0
  %290 = vmatpush1.msra.mxu0 0.0
  %291 = vmatprep.subr.mxu0 0.0
  %292 = vmatpush1.msra.mxu0 0.0
  %293 = vmatprep.subr.mxu0 0.0
  %294 = vmatpush1.msra.mxu0 0.0
  %295 = vmatprep.subr.mxu0 0.0
  %296 = vmatpush1.msra.mxu0 0.0
  %297 = vmatprep.subr.mxu0 0.0
  %298 = vmatpush1.msra.mxu0 0.0
  %299 = vmatprep.subr.mxu0 0.0
  %300 = vmatpush1.msra.mxu0 0.0
  %301 = vmatprep.subr.mxu0 0.0
  %302 = vmatpush1.msra.mxu0 0.0
  %303 = vmatprep.subr.mxu0 0.0
  %304 = vmatpush1.msra.mxu0 0.0
  %305 = vmatprep.subr.mxu0 0.0
  %306 = vmatpush1.msra.mxu0 0.0
  %307 = vmatprep.subr.mxu0 0.0
  %308 = vmatpush1.msra.mxu0 0.0
  %309 = vmatprep.subr.mxu0 0.0
  %310 = vmatpush1.msra.mxu0 0.0
  %311 = vmatprep.mubr.f32.mxu0 0.0
  %312 = vmatmul.mubr.f32.gmra.mrb[0].mxu0 %v242
  %v313 = vpop.f32.mrb[0].mxu0
  %v314 = vadd.f32 %v239, %v313
  %v315 = vpop.f32.mrb[0].mxu0
  %316 = vmatprep.mubr.f32.mxu0 0.0
  %317 = vmatmul.mubr.f32.gmra.mrb[0].mxu0 %v245
  %v318 = vpop.f32.mrb[0].mxu0
  %v319 = vadd.f32 %v239, %v318
  %v320 = vpop.f32.mrb[0].mxu0
  %321 = vdwg.mxu0
  %vm322 = vcmask 261120
  %v324 = vsel %vm322, 0.0, 0
  %326 = vmatprep.subr.mxu0 0.0
  %327 = vmatpush1.msra.mxu0 %v230
  %328 = vmatprep.subr.mxu0 0.0
  %329 = vmatpush1.msra.mxu0 %v231
  %330 = vmatprep.subr.mxu0 0.0
  %331 = vmatpush1.msra.mxu0 %v232
  %332 = vmatprep.subr.mxu0 0.0
  %333 = vmatpush1.msra.mxu0 %v233
  %334 = vmatprep.subr.mxu0 0.0
  %335 = vmatpush1.msra.mxu0 0.0
  %336 = vmatprep.subr.mxu0 0.0
  %337 = vmatpush1.msra.mxu0 0.0
  %338 = vmatprep.subr.mxu0 0.0
  %339 = vmatpush1.msra.mxu0 0.0
  %340 = vmatprep.subr.mxu0 0.0
  %341 = vmatpush1.msra.mxu0 0.0
  %342 = vmatprep.subr.mxu0 0.0
  %343 = vmatpush1.msra.mxu0 0.0
  %344 = vmatprep.subr.mxu0 0.0
  %345 = vmatpush1.msra.mxu0 0.0
  %346 = vmatprep.subr.mxu0 0.0
  %347 = vmatpush1.msra.mxu0 0.0
  %348 = vmatprep.subr.mxu0 0.0
  %349 = vmatpush1.msra.mxu0 0.0
  %350 = vmatprep.subr.mxu0 0.0
  %351 = vmatpush1.msra.mxu0 0.0
  %352 = vmatprep.subr.mxu0 0.0
  %353 = vmatpush1.msra.mxu0 0.0
  %354 = vmatprep.subr.mxu0 0.0
  %355 = vmatpush1.msra.mxu0 0.0
  %356 = vmatprep.subr.mxu0 0.0
  %357 = vmatpush1.msra.mxu0 0.0
  %358 = vmatprep.subr.mxu0 0.0
  %359 = vmatpush1.msra.mxu0 0.0
  %360 = vmatprep.subr.mxu0 0.0
  %361 = vmatpush1.msra.mxu0 0.0
  %362 = vmatprep.subr.mxu0 0.0
  %363 = vmatpush1.msra.mxu0 0.0
  %364 = vmatprep.subr.mxu0 0.0
  %365 = vmatpush1.msra.mxu0 0.0
  %366 = vmatprep.subr.mxu0 0.0
  %367 = vmatpush1.msra.mxu0 0.0
  %368 = vmatprep.subr.mxu0 0.0
  %369 = vmatpush1.msra.mxu0 0.0
  %370 = vmatprep.subr.mxu0 0.0
  %371 = vmatpush1.msra.mxu0 0.0
  %372 = vmatprep.subr.mxu0 0.0
  %373 = vmatpush1.msra.mxu0 0.0
  %374 = vmatprep.subr.mxu0 0.0
  %375 = vmatpush1.msra.mxu0 0.0
  %376 = vmatprep.subr.mxu0 0.0
  %377 = vmatpush1.msra.mxu0 0.0
  %378 = vmatprep.subr.mxu0 0.0
  %379 = vmatpush1.msra.mxu0 0.0
  %380 = vmatprep.subr.mxu0 0.0
  %381 = vmatpush1.msra.mxu0 0.0
  %382 = vmatprep.subr.mxu0 0.0
  %383 = vmatpush1.msra.mxu0 0.0
  %384 = vmatprep.subr.mxu0 0.0
  %385 = vmatpush1.msra.mxu0 0.0
  %386 = vmatprep.subr.mxu0 0.0
  %387 = vmatpush1.msra.mxu0 0.0
  %388 = vmatprep.subr.mxu0 0.0
  %389 = vmatpush1.msra.mxu0 0.0
  %390 = vmatprep.mubr.f32.mxu0 0.0
  %391 = vmatmul.mubr.f32.gmra.mrb[0].mxu0 %v324
  %v392 = vpop.f32.mrb[0].mxu0
  %v393 = vadd.f32 %v314, %v392
  %v394 = vpop.f32.mrb[0].mxu0
  %395 = vdwg.mxu0
  %v396 = vxor.u32 %v393, 2147483648
  %v397 = vmul.f32 %v396, 1.442695
  %v398 = vpow.pop %v397
  %v399 = vadd.f32 %v398, 1.0
  %v400 = vrcp.pop %v399
  %v401 = vmul.f32 1.0, %v400
  %v402 = vtanh.pop %v393
  %v403 = vmul.f32 %v401, 0.0
  %405 = vrot.lane.b32.xlu0 %v402, 64
  %v406 = vpop.permute.xlu0 %405
  %v408 = vmul.f32 %v401, %v406
  %410 = vrot.lane.b32.xlu0 %v408, 32
  %v411 = vpop.permute.xlu0 %410
  %v413 = vadd.f32 %v403, %v411
  %v414 = vtanh.pop %v413
  %416 = vrot.lane.b32.xlu0 %v414, 64
  %v417 = vpop.permute.xlu0 %416
  %v419 = vmul.f32 %v401, %v417
  %421 = vrot.lane.b32.xlu0 %v419, 32
  %v422 = vpop.permute.xlu0 %421
  %vm424 = vcmask 254976
  %425 = vst.msk [vmem:[#allocation2] sm:$0x3] %vm424, %v422
  %v427 = vrot.slane %v314, 2
  %v429 = vsel %vm322, %v422, 0
  %431 = vmatprep.subr.mxu0 0.0
  %432 = vmatpush1.msra.mxu0 %v230
  %433 = vmatprep.subr.mxu0 0.0
  %434 = vmatpush1.msra.mxu0 %v231
  %435 = vmatprep.subr.mxu0 0.0
  %436 = vmatpush1.msra.mxu0 %v232
  %437 = vmatprep.subr.mxu0 0.0
  %438 = vmatpush1.msra.mxu0 %v233
  %439 = vmatprep.subr.mxu0 0.0
  %440 = vmatpush1.msra.mxu0 0.0
  %441 = vmatprep.subr.mxu0 0.0
  %442 = vmatpush1.msra.mxu0 0.0
  %443 = vmatprep.subr.mxu0 0.0
  %444 = vmatpush1.msra.mxu0 0.0
  %445 = vmatprep.subr.mxu0 0.0
  %446 = vmatpush1.msra.mxu0 0.0
  %447 = vmatprep.subr.mxu0 0.0
  %448 = vmatpush1.msra.mxu0 0.0
  %449 = vmatprep.subr.mxu0 0.0
  %450 = vmatpush1.msra.mxu0 0.0
  %451 = vmatprep.subr.mxu0 0.0
  %452 = vmatpush1.msra.mxu0 0.0
  %453 = vmatprep.subr.mxu0 0.0
  %454 = vmatpush1.msra.mxu0 0.0
  %455 = vmatprep.subr.mxu0 0.0
  %456 = vmatpush1.msra.mxu0 0.0
  %457 = vmatprep.subr.mxu0 0.0
  %458 = vmatpush1.msra.mxu0 0.0
  %459 = vmatprep.subr.mxu0 0.0
  %460 = vmatpush1.msra.mxu0 0.0
  %461 = vmatprep.subr.mxu0 0.0
  %462 = vmatpush1.msra.mxu0 0.0
  %463 = vmatprep.subr.mxu0 0.0
  %464 = vmatpush1.msra.mxu0 0.0
  %465 = vmatprep.subr.mxu0 0.0
  %466 = vmatpush1.msra.mxu0 0.0
  %467 = vmatprep.subr.mxu0 0.0
  %468 = vmatpush1.msra.mxu0 0.0
  %469 = vmatprep.subr.mxu0 0.0
  %470 = vmatpush1.msra.mxu0 0.0
  %471 = vmatprep.subr.mxu0 0.0
  %472 = vmatpush1.msra.mxu0 0.0
  %473 = vmatprep.subr.mxu0 0.0
  %474 = vmatpush1.msra.mxu0 0.0
  %475 = vmatprep.subr.mxu0 0.0
  %476 = vmatpush1.msra.mxu0 0.0
  %477 = vmatprep.subr.mxu0 0.0
  %478 = vmatpush1.msra.mxu0 0.0
  %479 = vmatprep.subr.mxu0 0.0
  %480 = vmatpush1.msra.mxu0 0.0
  %481 = vmatprep.subr.mxu0 0.0
  %482 = vmatpush1.msra.mxu0 0.0
  %483 = vmatprep.subr.mxu0 0.0
  %484 = vmatpush1.msra.mxu0 0.0
  %485 = vmatprep.subr.mxu0 0.0
  %486 = vmatpush1.msra.mxu0 0.0
  %487 = vmatprep.subr.mxu0 0.0
  %488 = vmatpush1.msra.mxu0 0.0
  %489 = vmatprep.subr.mxu0 0.0
  %490 = vmatpush1.msra.mxu0 0.0
  %491 = vmatprep.subr.mxu0 0.0
  %492 = vmatpush1.msra.mxu0 0.0
  %493 = vmatprep.subr.mxu0 0.0
  %494 = vmatpush1.msra.mxu0 0.0
  %495 = vmatprep.mubr.f32.mxu0 0.0
  %496 = vmatmul.mubr.f32.gmra.mrb[0].mxu0 %v429
  %v497 = vpop.f32.mrb[0].mxu0
  %v498 = vadd.f32 %v427, %v497
  %v499 = vpop.f32.mrb[0].mxu0
  %500 = vdwg.mxu0
  %v501 = vxor.u32 %v498, 2147483648
  %v502 = vmul.f32 %v501, 1.442695
  %v503 = vpow.pop %v502
  %v504 = vadd.f32 %v503, 1.0
  %v505 = vrcp.pop %v504
  %v506 = vmul.f32 1.0, %v505
  %v507 = vtanh.pop %v498
  %v508 = vmul.f32 %v506, %v413
  %510 = vrot.lane.b32.xlu0 %v507, 64
  %v511 = vpop.permute.xlu0 %510
  %v513 = vmul.f32 %v506, %v511
  %515 = vrot.lane.b32.xlu0 %v513, 32
  %v516 = vpop.permute.xlu0 %515
  %v518 = vadd.f32 %v508, %v516
  %v519 = vtanh.pop %v518
  %521 = vrot.lane.b32.xlu0 %v519, 64
  %v522 = vpop.permute.xlu0 %521
  %v524 = vmul.f32 %v506, %v522
  %526 = vrot.lane.b32.xlu0 %v524, 32
  %v527 = vpop.permute.xlu0 %526
  %529 = vst.msk [vmem:[#allocation2 + $0x2] sm:$0x3] %vm424, %v527
  %v530 = vrot.slane %v314, 4
  %v532 = vsel %vm322, %v527, 0
  %534 = vmatprep.subr.mxu0 0.0
  %535 = vmatpush1.msra.mxu0 %v230
  %536 = vmatprep.subr.mxu0 0.0
  %537 = vmatpush1.msra.mxu0 %v231
  %538 = vmatprep.subr.mxu0 0.0
  %539 = vmatpush1.msra.mxu0 %v232
  %540 = vmatprep.subr.mxu0 0.0
  %541 = vmatpush1.msra.mxu0 %v233
  %542 = vmatprep.subr.mxu0 0.0
  %543 = vmatpush1.msra.mxu0 0.0
  %544 = vmatprep.subr.mxu0 0.0
  %545 = vmatpush1.msra.mxu0 0.0
  %546 = vmatprep.subr.mxu0 0.0
  %547 = vmatpush1.msra.mxu0 0.0
  %548 = vmatprep.subr.mxu0 0.0
  %549 = vmatpush1.msra.mxu0 0.0
  %550 = vmatprep.subr.mxu0 0.0
  %551 = vmatpush1.msra.mxu0 0.0
  %552 = vmatprep.subr.mxu0 0.0
  %553 = vmatpush1.msra.mxu0 0.0
  %554 = vmatprep.subr.mxu0 0.0
  %555 = vmatpush1.msra.mxu0 0.0
  %556 = vmatprep.subr.mxu0 0.0
  %557 = vmatpush1.msra.mxu0 0.0
  %558 = vmatprep.subr.mxu0 0.0
  %559 = vmatpush1.msra.mxu0 0.0
  %560 = vmatprep.subr.mxu0 0.0
  %561 = vmatpush1.msra.mxu0 0.0
  %562 = vmatprep.subr.mxu0 0.0
  %563 = vmatpush1.msra.mxu0 0.0
  %564 = vmatprep.subr.mxu0 0.0
  %565 = vmatpush1.msra.mxu0 0.0
  %566 = vmatprep.subr.mxu0 0.0
  %567 = vmatpush1.msra.mxu0 0.0
  %568 = vmatprep.subr.mxu0 0.0
  %569 = vmatpush1.msra.mxu0 0.0
  %570 = vmatprep.subr.mxu0 0.0
  %571 = vmatpush1.msra.mxu0 0.0
  %572 = vmatprep.subr.mxu0 0.0
  %573 = vmatpush1.msra.mxu0 0.0
  %574 = vmatprep.subr.mxu0 0.0
  %575 = vmatpush1.msra.mxu0 0.0
  %576 = vmatprep.subr.mxu0 0.0
  %577 = vmatpush1.msra.mxu0 0.0
  %578 = vmatprep.subr.mxu0 0.0
  %579 = vmatpush1.msra.mxu0 0.0
  %580 = vmatprep.subr.mxu0 0.0
  %581 = vmatpush1.msra.mxu0 0.0
  %582 = vmatprep.subr.mxu0 0.0
  %583 = vmatpush1.msra.mxu0 0.0
  %584 = vmatprep.subr.mxu0 0.0
  %585 = vmatpush1.msra.mxu0 0.0
  %586 = vmatprep.subr.mxu0 0.0
  %587 = vmatpush1.msra.mxu0 0.0
  %588 = vmatprep.subr.mxu0 0.0
  %589 = vmatpush1.msra.mxu0 0.0
  %590 = vmatprep.subr.mxu0 0.0
  %591 = vmatpush1.msra.mxu0 0.0
  %592 = vmatprep.subr.mxu0 0.0
  %593 = vmatpush1.msra.mxu0 0.0
  %594 = vmatprep.subr.mxu0 0.0
  %595 = vmatpush1.msra.mxu0 0.0
  %596 = vmatprep.subr.mxu0 0.0
  %597 = vmatpush1.msra.mxu0 0.0
  %598 = vmatprep.mubr.f32.mxu0 0.0
  %599 = vmatmul.mubr.f32.gmra.mrb[0].mxu0 %v532
  %v600 = vpop.f32.mrb[0].mxu0
  %v601 = vadd.f32 %v530, %v600
  %v602 = vpop.f32.mrb[0].mxu0
  %603 = vdwg.mxu0
  %v604 = vxor.u32 %v601, 2147483648
  %v605 = vmul.f32 %v604, 1.442695
  %v606 = vpow.pop %v605
  %v607 = vadd.f32 %v606, 1.0
  %v608 = vrcp.pop %v607
  %v609 = vmul.f32 1.0, %v608
  %v610 = vtanh.pop %v601
  %v611 = vmul.f32 %v609, %v518
  %613 = vrot.lane.b32.xlu0 %v610, 64
  %v614 = vpop.permute.xlu0 %613
  %v616 = vmul.f32 %v609, %v614
  %618 = vrot.lane.b32.xlu0 %v616, 32
  %v619 = vpop.permute.xlu0 %618
  %v621 = vadd.f32 %v611, %v619
  %v622 = vtanh.pop %v621
  %624 = vrot.lane.b32.xlu0 %v622, 64
  %v625 = vpop.permute.xlu0 %624
  %v627 = vmul.f32 %v609, %v625
  %629 = vrot.lane.b32.xlu0 %v627, 32
  %v630 = vpop.permute.xlu0 %629
  %632 = vst.msk [vmem:[#allocation2 + $0x4] sm:$0x3] %vm424, %v630
  %v633 = vrot.slane %v314, 6
  %v635 = vsel %vm322, %v630, 0
  %637 = vmatprep.subr.mxu0 0.0
  %638 = vmatpush1.msra.mxu0 %v230
  %639 = vmatprep.subr.mxu0 0.0
  %640 = vmatpush1.msra.mxu0 %v231
  %641 = vmatprep.subr.mxu0 0.0
  %642 = vmatpush1.msra.mxu0 %v232
  %643 = vmatprep.subr.mxu0 0.0
  %644 = vmatpush1.msra.mxu0 %v233
  %645 = vmatprep.subr.mxu0 0.0
  %646 = vmatpush1.msra.mxu0 0.0
  %647 = vmatprep.subr.mxu0 0.0
  %648 = vmatpush1.msra.mxu0 0.0
  %649 = vmatprep.subr.mxu0 0.0
  %650 = vmatpush1.msra.mxu0 0.0
  %651 = vmatprep.subr.mxu0 0.0
  %652 = vmatpush1.msra.mxu0 0.0
  %653 = vmatprep.subr.mxu0 0.0
  %654 = vmatpush1.msra.mxu0 0.0
  %655 = vmatprep.subr.mxu0 0.0
  %656 = vmatpush1.msra.mxu0 0.0
  %657 = vmatprep.subr.mxu0 0.0
  %658 = vmatpush1.msra.mxu0 0.0
  %659 = vmatprep.subr.mxu0 0.0
  %660 = vmatpush1.msra.mxu0 0.0
  %661 = vmatprep.subr.mxu0 0.0
  %662 = vmatpush1.msra.mxu0 0.0
  %663 = vmatprep.subr.mxu0 0.0
  %664 = vmatpush1.msra.mxu0 0.0
  %665 = vmatprep.subr.mxu0 0.0
  %666 = vmatpush1.msra.mxu0 0.0
  %667 = vmatprep.subr.mxu0 0.0
  %668 = vmatpush1.msra.mxu0 0.0
  %669 = vmatprep.subr.mxu0 0.0
  %670 = vmatpush1.msra.mxu0 0.0
  %671 = vmatprep.subr.mxu0 0.0
  %672 = vmatpush1.msra.mxu0 0.0
  %673 = vmatprep.subr.mxu0 0.0
  %674 = vmatpush1.msra.mxu0 0.0
  %675 = vmatprep.subr.mxu0 0.0
  %676 = vmatpush1.msra.mxu0 0.0
  %677 = vmatprep.subr.mxu0 0.0
  %678 = vmatpush1.msra.mxu0 0.0
  %679 = vmatprep.subr.mxu0 0.0
  %680 = vmatpush1.msra.mxu0 0.0
  %681 = vmatprep.subr.mxu0 0.0
  %682 = vmatpush1.msra.mxu0 0.0
  %683 = vmatprep.subr.mxu0 0.0
  %684 = vmatpush1.msra.mxu0 0.0
  %685 = vmatprep.subr.mxu0 0.0
  %686 = vmatpush1.msra.mxu0 0.0
  %687 = vmatprep.subr.mxu0 0.0
  %688 = vmatpush1.msra.mxu0 0.0
  %689 = vmatprep.subr.mxu0 0.0
  %690 = vmatpush1.msra.mxu0 0.0
  %691 = vmatprep.subr.mxu0 0.0
  %692 = vmatpush1.msra.mxu0 0.0
  %693 = vmatprep.subr.mxu0 0.0
  %694 = vmatpush1.msra.mxu0 0.0
  %695 = vmatprep.subr.mxu0 0.0
  %696 = vmatpush1.msra.mxu0 0.0
  %697 = vmatprep.subr.mxu0 0.0
  %698 = vmatpush1.msra.mxu0 0.0
  %699 = vmatprep.subr.mxu0 0.0
  %700 = vmatpush1.msra.mxu0 0.0
  %701 = vmatprep.mubr.f32.mxu0 0.0
  %702 = vmatmul.mubr.f32.gmra.mrb[0].mxu0 %v635
  %v703 = vpop.f32.mrb[0].mxu0
  %v704 = vadd.f32 %v633, %v703
  %v705 = vpop.f32.mrb[0].mxu0
  %706 = vdwg.mxu0
  %v707 = vxor.u32 %v704, 2147483648
  %v708 = vmul.f32 %v707, 1.442695
  %v709 = vpow.pop %v708
  %v710 = vadd.f32 %v709, 1.0
  %v711 = vrcp.pop %v710
  %v712 = vmul.f32 1.0, %v711
  %v713 = vtanh.pop %v704
  %v714 = vmul.f32 %v712, %v621
  %716 = vrot.lane.b32.xlu0 %v713, 64
  %v717 = vpop.permute.xlu0 %716
  %v719 = vmul.f32 %v712, %v717
  %721 = vrot.lane.b32.xlu0 %v719, 32
  %v722 = vpop.permute.xlu0 %721
  %v724 = vadd.f32 %v714, %v722
  %v725 = vtanh.pop %v724
  %727 = vrot.lane.b32.xlu0 %v725, 64
  %v728 = vpop.permute.xlu0 %727
  %v730 = vmul.f32 %v712, %v728
  %732 = vrot.lane.b32.xlu0 %v730, 32
  %v733 = vpop.permute.xlu0 %732
  %735 = vst.msk [vmem:[#allocation2 + $0x6] sm:$0x3] %vm424, %v733
  %v736 = vsel %vm322, %v733, 0
  %738 = vmatprep.subr.mxu0 0.0
  %739 = vmatpush1.msra.mxu0 %v230
  %740 = vmatprep.subr.mxu0 0.0
  %741 = vmatpush1.msra.mxu0 %v231
  %742 = vmatprep.subr.mxu0 0.0
  %743 = vmatpush1.msra.mxu0 %v232
  %744 = vmatprep.subr.mxu0 0.0
  %745 = vmatpush1.msra.mxu0 %v233
  %746 = vmatprep.subr.mxu0 0.0
  %747 = vmatpush1.msra.mxu0 0.0
  %748 = vmatprep.subr.mxu0 0.0
  %749 = vmatpush1.msra.mxu0 0.0
  %750 = vmatprep.subr.mxu0 0.0
  %751 = vmatpush1.msra.mxu0 0.0
  %752 = vmatprep.subr.mxu0 0.0
  %753 = vmatpush1.msra.mxu0 0.0
  %754 = vmatprep.subr.mxu0 0.0
  %755 = vmatpush1.msra.mxu0 0.0
  %756 = vmatprep.subr.mxu0 0.0
  %757 = vmatpush1.msra.mxu0 0.0
  %758 = vmatprep.subr.mxu0 0.0
  %759 = vmatpush1.msra.mxu0 0.0
  %760 = vmatprep.subr.mxu0 0.0
  %761 = vmatpush1.msra.mxu0 0.0
  %762 = vmatprep.subr.mxu0 0.0
  %763 = vmatpush1.msra.mxu0 0.0
  %764 = vmatprep.subr.mxu0 0.0
  %765 = vmatpush1.msra.mxu0 0.0
  %766 = vmatprep.subr.mxu0 0.0
  %767 = vmatpush1.msra.mxu0 0.0
  %768 = vmatprep.subr.mxu0 0.0
  %769 = vmatpush1.msra.mxu0 0.0
  %770 = vmatprep.subr.mxu0 0.0
  %771 = vmatpush1.msra.mxu0 0.0
  %772 = vmatprep.subr.mxu0 0.0
  %773 = vmatpush1.msra.mxu0 0.0
  %774 = vmatprep.subr.mxu0 0.0
  %775 = vmatpush1.msra.mxu0 0.0
  %776 = vmatprep.subr.mxu0 0.0
  %777 = vmatpush1.msra.mxu0 0.0
  %778 = vmatprep.subr.mxu0 0.0
  %779 = vmatpush1.msra.mxu0 0.0
  %780 = vmatprep.subr.mxu0 0.0
  %781 = vmatpush1.msra.mxu0 0.0
  %782 = vmatprep.subr.mxu0 0.0
  %783 = vmatpush1.msra.mxu0 0.0
  %784 = vmatprep.subr.mxu0 0.0
  %785 = vmatpush1.msra.mxu0 0.0
  %786 = vmatprep.subr.mxu0 0.0
  %787 = vmatpush1.msra.mxu0 0.0
  %788 = vmatprep.subr.mxu0 0.0
  %789 = vmatpush1.msra.mxu0 0.0
  %790 = vmatprep.subr.mxu0 0.0
  %791 = vmatpush1.msra.mxu0 0.0
  %792 = vmatprep.subr.mxu0 0.0
  %793 = vmatpush1.msra.mxu0 0.0
  %794 = vmatprep.subr.mxu0 0.0
  %795 = vmatpush1.msra.mxu0 0.0
  %796 = vmatprep.subr.mxu0 0.0
  %797 = vmatpush1.msra.mxu0 0.0
  %798 = vmatprep.subr.mxu0 0.0
  %799 = vmatpush1.msra.mxu0 0.0
  %800 = vmatprep.subr.mxu0 0.0
  %801 = vmatpush1.msra.mxu0 0.0
  %802 = vmatprep.mubr.f32.mxu0 0.0
  %803 = vmatmul.mubr.f32.gmra.mrb[0].mxu0 %v736
  %v804 = vpop.f32.mrb[0].mxu0
  %v805 = vadd.f32 %v319, %v804
  %v806 = vpop.f32.mrb[0].mxu0
  %807 = vdwg.mxu0
  %v808 = vxor.u32 %v805, 2147483648
  %v809 = vmul.f32 %v808, 1.442695
  %v810 = vpow.pop %v809
  %v811 = vadd.f32 %v810, 1.0
  %v812 = vrcp.pop %v811
  %v813 = vmul.f32 1.0, %v812
  %v814 = vtanh.pop %v805
  %v815 = vmul.f32 %v813, %v724
  %817 = vrot.lane.b32.xlu0 %v814, 64
  %v818 = vpop.permute.xlu0 %817
  %v820 = vmul.f32 %v813, %v818
  %822 = vrot.lane.b32.xlu0 %v820, 32
  %v823 = vpop.permute.xlu0 %822
  %v825 = vadd.f32 %v815, %v823
  %v826 = vtanh.pop %v825
  %828 = vrot.lane.b32.xlu0 %v826, 64
  %v829 = vpop.permute.xlu0 %828
  %v831 = vmul.f32 %v813, %v829
  %833 = vrot.lane.b32.xlu0 %v831, 32
  %v834 = vpop.permute.xlu0 %833
  %836 = vst.msk [vmem:[#allocation2 + $0x8] sm:$0x3] %vm424, %v834
  %v838 = vrot.slane %v319, 2
  %v840 = vsel %vm322, %v834, 0
  %842 = vmatprep.subr.mxu0 0.0
  %843 = vmatpush1.msra.mxu0 %v230
  %844 = vmatprep.subr.mxu0 0.0
  %845 = vmatpush1.msra.mxu0 %v231
  %846 = vmatprep.subr.mxu0 0.0
  %847 = vmatpush1.msra.mxu0 %v232
  %848 = vmatprep.subr.mxu0 0.0
  %849 = vmatpush1.msra.mxu0 %v233
  %850 = vmatprep.subr.mxu0 0.0
  %851 = vmatpush1.msra.mxu0 0.0
  %852 = vmatprep.subr.mxu0 0.0
  %853 = vmatpush1.msra.mxu0 0.0
  %854 = vmatprep.subr.mxu0 0.0
  %855 = vmatpush1.msra.mxu0 0.0
  %856 = vmatprep.subr.mxu0 0.0
  %857 = vmatpush1.msra.mxu0 0.0
  %858 = vmatprep.subr.mxu0 0.0
  %859 = vmatpush1.msra.mxu0 0.0
  %860 = vmatprep.subr.mxu0 0.0
  %861 = vmatpush1.msra.mxu0 0.0
  %862 = vmatprep.subr.mxu0 0.0
  %863 = vmatpush1.msra.mxu0 0.0
  %864 = vmatprep.subr.mxu0 0.0
  %865 = vmatpush1.msra.mxu0 0.0
  %866 = vmatprep.subr.mxu0 0.0
  %867 = vmatpush1.msra.mxu0 0.0
  %868 = vmatprep.subr.mxu0 0.0
  %869 = vmatpush1.msra.mxu0 0.0
  %870 = vmatprep.subr.mxu0 0.0
  %871 = vmatpush1.msra.mxu0 0.0
  %872 = vmatprep.subr.mxu0 0.0
  %873 = vmatpush1.msra.mxu0 0.0
  %874 = vmatprep.subr.mxu0 0.0
  %875 = vmatpush1.msra.mxu0 0.0
  %876 = vmatprep.subr.mxu0 0.0
  %877 = vmatpush1.msra.mxu0 0.0
  %878 = vmatprep.subr.mxu0 0.0
  %879 = vmatpush1.msra.mxu0 0.0
  %880 = vmatprep.subr.mxu0 0.0
  %881 = vmatpush1.msra.mxu0 0.0
  %882 = vmatprep.subr.mxu0 0.0
  %883 = vmatpush1.msra.mxu0 0.0
  %884 = vmatprep.subr.mxu0 0.0
  %885 = vmatpush1.msra.mxu0 0.0
  %886 = vmatprep.subr.mxu0 0.0
  %887 = vmatpush1.msra.mxu0 0.0
  %888 = vmatprep.subr.mxu0 0.0
  %889 = vmatpush1.msra.mxu0 0.0
  %890 = vmatprep.subr.mxu0 0.0
  %891 = vmatpush1.msra.mxu0 0.0
  %892 = vmatprep.subr.mxu0 0.0
  %893 = vmatpush1.msra.mxu0 0.0
  %894 = vmatprep.subr.mxu0 0.0
  %895 = vmatpush1.msra.mxu0 0.0
  %896 = vmatprep.subr.mxu0 0.0
  %897 = vmatpush1.msra.mxu0 0.0
  %898 = vmatprep.subr.mxu0 0.0
  %899 = vmatpush1.msra.mxu0 0.0
  %900 = vmatprep.subr.mxu0 0.0
  %901 = vmatpush1.msra.mxu0 0.0
  %902 = vmatprep.subr.mxu0 0.0
  %903 = vmatpush1.msra.mxu0 0.0
  %904 = vmatprep.subr.mxu0 0.0
  %905 = vmatpush1.msra.mxu0 0.0
  %906 = vmatprep.mubr.f32.mxu0 0.0
  %907 = vmatmul.mubr.f32.gmra.mrb[0].mxu0 %v840
  %v908 = vpop.f32.mrb[0].mxu0
  %v909 = vadd.f32 %v838, %v908
  %v910 = vpop.f32.mrb[0].mxu0
  %911 = vdwg.mxu0
  %v912 = vxor.u32 %v909, 2147483648
  %v913 = vmul.f32 %v912, 1.442695
  %v914 = vpow.pop %v913
  %v915 = vadd.f32 %v914, 1.0
  %v916 = vrcp.pop %v915
  %v917 = vmul.f32 1.0, %v916
  %v918 = vtanh.pop %v909
  %v919 = vmul.f32 %v917, %v825
  %921 = vrot.lane.b32.xlu0 %v918, 64
  %v922 = vpop.permute.xlu0 %921
  %v924 = vmul.f32 %v917, %v922
  %926 = vrot.lane.b32.xlu0 %v924, 32
  %v927 = vpop.permute.xlu0 %926
  %v929 = vadd.f32 %v919, %v927
  %v930 = vtanh.pop %v929
  %932 = vrot.lane.b32.xlu0 %v930, 64
  %v933 = vpop.permute.xlu0 %932
  %v935 = vmul.f32 %v917, %v933
  %937 = vrot.lane.b32.xlu0 %v935, 32
  %v938 = vpop.permute.xlu0 %937
  %940 = vst.msk [vmem:[#allocation2 + $0xa] sm:$0x3] %vm424, %v938
  %v941 = vrot.slane %v319, 4
  %v943 = vsel %vm322, %v938, 0
  %945 = vmatprep.subr.mxu0 0.0
  %946 = vmatpush1.msra.mxu0 %v230
  %947 = vmatprep.subr.mxu0 0.0
  %948 = vmatpush1.msra.mxu0 %v231
  %949 = vmatprep.subr.mxu0 0.0
  %950 = vmatpush1.msra.mxu0 %v232
  %951 = vmatprep.subr.mxu0 0.0
  %952 = vmatpush1.msra.mxu0 %v233
  %953 = vmatprep.subr.mxu0 0.0
  %954 = vmatpush1.msra.mxu0 0.0
  %955 = vmatprep.subr.mxu0 0.0
  %956 = vmatpush1.msra.mxu0 0.0
  %957 = vmatprep.subr.mxu0 0.0
  %958 = vmatpush1.msra.mxu0 0.0
  %959 = vmatprep.subr.mxu0 0.0
  %960 = vmatpush1.msra.mxu0 0.0
  %961 = vmatprep.subr.mxu0 0.0
  %962 = vmatpush1.msra.mxu0 0.0
  %963 = vmatprep.subr.mxu0 0.0
  %964 = vmatpush1.msra.mxu0 0.0
  %965 = vmatprep.subr.mxu0 0.0
  %966 = vmatpush1.msra.mxu0 0.0
  %967 = vmatprep.subr.mxu0 0.0
  %968 = vmatpush1.msra.mxu0 0.0
  %969 = vmatprep.subr.mxu0 0.0
  %970 = vmatpush1.msra.mxu0 0.0
  %971 = vmatprep.subr.mxu0 0.0
  %972 = vmatpush1.msra.mxu0 0.0
  %973 = vmatprep.subr.mxu0 0.0
  %974 = vmatpush1.msra.mxu0 0.0
  %975 = vmatprep.subr.mxu0 0.0
  %976 = vmatpush1.msra.mxu0 0.0
  %977 = vmatprep.subr.mxu0 0.0
  %978 = vmatpush1.msra.mxu0 0.0
  %979 = vmatprep.subr.mxu0 0.0
  %980 = vmatpush1.msra.mxu0 0.0
  %981 = vmatprep.subr.mxu0 0.0
  %982 = vmatpush1.msra.mxu0 0.0
  %983 = vmatprep.subr.mxu0 0.0
  %984 = vmatpush1.msra.mxu0 0.0
  %985 = vmatprep.subr.mxu0 0.0
  %986 = vmatpush1.msra.mxu0 0.0
  %987 = vmatprep.subr.mxu0 0.0
  %988 = vmatpush1.msra.mxu0 0.0
  %989 = vmatprep.subr.mxu0 0.0
  %990 = vmatpush1.msra.mxu0 0.0
  %991 = vmatprep.subr.mxu0 0.0
  %992 = vmatpush1.msra.mxu0 0.0
  %993 = vmatprep.subr.mxu0 0.0
  %994 = vmatpush1.msra.mxu0 0.0
  %995 = vmatprep.subr.mxu0 0.0
  %996 = vmatpush1.msra.mxu0 0.0
  %997 = vmatprep.subr.mxu0 0.0
  %998 = vmatpush1.msra.mxu0 0.0
  %999 = vmatprep.subr.mxu0 0.0
  %1000 = vmatpush1.msra.mxu0 0.0
  %1001 = vmatprep.subr.mxu0 0.0
  %1002 = vmatpush1.msra.mxu0 0.0
  %1003 = vmatprep.subr.mxu0 0.0
  %1004 = vmatpush1.msra.mxu0 0.0
  %1005 = vmatprep.subr.mxu0 0.0
  %1006 = vmatpush1.msra.mxu0 0.0
  %1007 = vmatprep.subr.mxu0 0.0
  %1008 = vmatpush1.msra.mxu0 0.0
  %1009 = vmatprep.mubr.f32.mxu0 0.0
  %1010 = vmatmul.mubr.f32.gmra.mrb[0].mxu0 %v943
  %v1011 = vpop.f32.mrb[0].mxu0
  %v1012 = vadd.f32 %v941, %v1011
  %v1013 = vpop.f32.mrb[0].mxu0
  %1014 = vdwg.mxu0
  %v1015 = vxor.u32 %v1012, 2147483648
  %v1016 = vmul.f32 %v1015, 1.442695
  %v1017 = vpow.pop %v1016
  %v1018 = vadd.f32 %v1017, 1.0
  %v1019 = vrcp.pop %v1018
  %v1020 = vmul.f32 1.0, %v1019
  %v1021 = vtanh.pop %v1012
  %v1022 = vmul.f32 %v1020, %v929
  %1024 = vrot.lane.b32.xlu0 %v1021, 64
  %v1025 = vpop.permute.xlu0 %1024
  %v1027 = vmul.f32 %v1020, %v1025
  %1029 = vrot.lane.b32.xlu0 %v1027, 32
  %v1030 = vpop.permute.xlu0 %1029
  %v1032 = vadd.f32 %v1022, %v1030
  %v1033 = vtanh.pop %v1032
  %1035 = vrot.lane.b32.xlu0 %v1033, 64
  %v1036 = vpop.permute.xlu0 %1035
  %v1038 = vmul.f32 %v1020, %v1036
  %1040 = vrot.lane.b32.xlu0 %v1038, 32
  %v1041 = vpop.permute.xlu0 %1040
  %1043 = vst.msk [vmem:[#allocation2 + $0xc] sm:$0x3] %vm424, %v1041
  %v1044 = vrot.slane %v319, 6
  %v1046 = vsel %vm322, %v1041, 0
  %1048 = vmatprep.subr.mxu0 0.0
  %1049 = vmatpush1.msra.mxu0 %v230
  %1050 = vmatprep.subr.mxu0 0.0
  %1051 = vmatpush1.msra.mxu0 %v231
  %1052 = vmatprep.subr.mxu0 0.0
  %1053 = vmatpush1.msra.mxu0 %v232
  %1054 = vmatprep.subr.mxu0 0.0
  %1055 = vmatpush1.msra.mxu0 %v233
  %1056 = vmatprep.subr.mxu0 0.0
  %1057 = vmatpush1.msra.mxu0 0.0
  %1058 = vmatprep.subr.mxu0 0.0
  %1059 = vmatpush1.msra.mxu0 0.0
  %1060 = vmatprep.subr.mxu0 0.0
  %1061 = vmatpush1.msra.mxu0 0.0
  %1062 = vmatprep.subr.mxu0 0.0
  %1063 = vmatpush1.msra.mxu0 0.0
  %1064 = vmatprep.subr.mxu0 0.0
  %1065 = vmatpush1.msra.mxu0 0.0
  %1066 = vmatprep.subr.mxu0 0.0
  %1067 = vmatpush1.msra.mxu0 0.0
  %1068 = vmatprep.subr.mxu0 0.0
  %1069 = vmatpush1.msra.mxu0 0.0
  %1070 = vmatprep.subr.mxu0 0.0
  %1071 = vmatpush1.msra.mxu0 0.0
  %1072 = vmatprep.subr.mxu0 0.0
  %1073 = vmatpush1.msra.mxu0 0.0
  %1074 = vmatprep.subr.mxu0 0.0
  %1075 = vmatpush1.msra.mxu0 0.0
  %1076 = vmatprep.subr.mxu0 0.0
  %1077 = vmatpush1.msra.mxu0 0.0
  %1078 = vmatprep.subr.mxu0 0.0
  %1079 = vmatpush1.msra.mxu0 0.0
  %1080 = vmatprep.subr.mxu0 0.0
  %1081 = vmatpush1.msra.mxu0 0.0
  %1082 = vmatprep.subr.mxu0 0.0
  %1083 = vmatpush1.msra.mxu0 0.0
  %1084 = vmatprep.subr.mxu0 0.0
  %1085 = vmatpush1.msra.mxu0 0.0
  %1086 = vmatprep.subr.mxu0 0.0
  %1087 = vmatpush1.msra.mxu0 0.0
  %1088 = vmatprep.subr.mxu0 0.0
  %1089 = vmatpush1.msra.mxu0 0.0
  %1090 = vmatprep.subr.mxu0 0.0
  %1091 = vmatpush1.msra.mxu0 0.0
  %1092 = vmatprep.subr.mxu0 0.0
  %1093 = vmatpush1.msra.mxu0 0.0
  %1094 = vmatprep.subr.mxu0 0.0
  %1095 = vmatpush1.msra.mxu0 0.0
  %1096 = vmatprep.subr.mxu0 0.0
  %1097 = vmatpush1.msra.mxu0 0.0
  %1098 = vmatprep.subr.mxu0 0.0
  %1099 = vmatpush1.msra.mxu0 0.0
  %1100 = vmatprep.subr.mxu0 0.0
  %1101 = vmatpush1.msra.mxu0 0.0
  %1102 = vmatprep.subr.mxu0 0.0
  %1103 = vmatpush1.msra.mxu0 0.0
  %1104 = vmatprep.subr.mxu0 0.0
  %1105 = vmatpush1.msra.mxu0 0.0
  %1106 = vmatprep.subr.mxu0 0.0
  %1107 = vmatpush1.msra.mxu0 0.0
  %1108 = vmatprep.subr.mxu0 0.0
  %1109 = vmatpush1.msra.mxu0 0.0
  %1110 = vmatprep.subr.mxu0 0.0
  %1111 = vmatpush1.msra.mxu0 0.0
  %1112 = vmatprep.mubr.f32.mxu0 0.0
  %1113 = vmatmul.mubr.f32.gmra.mrb[0].mxu0 %v1046
  %v1114 = vpop.f32.mrb[0].mxu0
  %v1115 = vadd.f32 %v1044, %v1114
  %v1116 = vpop.f32.mrb[0].mxu0
  %1117 = vdwg.mxu0
  %v1118 = vxor.u32 %v1115, 2147483648
  %v1119 = vmul.f32 %v1118, 1.442695
  %v1120 = vpow.pop %v1119
  %v1121 = vadd.f32 %v1120, 1.0
  %v1122 = vrcp.pop %v1121
  %v1123 = vmul.f32 1.0, %v1122
  %v1124 = vtanh.pop %v1115
  %v1125 = vmul.f32 %v1123, %v1032
  %1127 = vrot.lane.b32.xlu0 %v1124, 64
  %v1128 = vpop.permute.xlu0 %1127
  %v1130 = vmul.f32 %v1123, %v1128
  %1132 = vrot.lane.b32.xlu0 %v1130, 32
  %v1133 = vpop.permute.xlu0 %1132
  %v1135 = vadd.f32 %v1125, %v1133
  %v1136 = vtanh.pop %v1135
  %1138 = vrot.lane.b32.xlu0 %v1136, 64
  %v1139 = vpop.permute.xlu0 %1138
  %v1141 = vmul.f32 %v1123, %v1139
  %1143 = vrot.lane.b32.xlu0 %v1141, 32
  %v1144 = vpop.permute.xlu0 %1143
  %1146 = vst.msk [vmem:[#allocation2 + $0xe] sm:$0x3] %vm424, %v1144
  %v1147 = vld [vmem:[#allocation2] sm:$0xff]
  %v1148 = vld [vmem:[#allocation2 + $0x8] sm:$0xff]
  %v1149 = vld [vmem:[%s8] sm:$0xff]
  %v1150 = vld [vmem:[%s8 + $0x8] sm:$0xff]
  %v1151 = vld [vmem:[%s8 + $0x10] sm:$0xff]
  %v1152 = vld [vmem:[%s8 + $0x18] sm:$0xff]
  %v1153 = vld [vmem:[%s9] sm:$0xff]
  %v1154 = vld [vmem:[%s9 + $0x8] sm:$0xff]
  %v1155 = vld [vmem:[%s9 + $0x10] sm:$0xff]
  %v1156 = vld [vmem:[%s9 + $0x18] sm:$0xff]
  %v1157 = vld [vmem:[%s10] sm:$0x1]
  %v1159 = vlaneseq
  %v1160 = vshrl.u32 %v1159, 7
  %v1161 = vsub.s32 0, %v1160
  %v1162 = vrot.slane %v1157, %v1161
  %v1165 = vsel %vm322, %v1147, 0
  %v1168 = vsel %vm322, %v1148, 0
  %1170 = vmatprep.subr.mxu0 0.0
  %1171 = vmatpush1.msra.mxu0 %v1149
  %1172 = vmatprep.subr.mxu0 0.0
  %1173 = vmatpush1.msra.mxu0 %v1150
  %1174 = vmatprep.subr.mxu0 0.0
  %1175 = vmatpush1.msra.mxu0 %v1151
  %1176 = vmatprep.subr.mxu0 0.0
  %1177 = vmatpush1.msra.mxu0 %v1152
  %1178 = vmatprep.subr.mxu0 0.0
  %1179 = vmatpush1.msra.mxu0 0.0
  %1180 = vmatprep.subr.mxu0 0.0
  %1181 = vmatpush1.msra.mxu0 0.0
  %1182 = vmatprep.subr.mxu0 0.0
  %1183 = vmatpush1.msra.mxu0 0.0
  %1184 = vmatprep.subr.mxu0 0.0
  %1185 = vmatpush1.msra.mxu0 0.0
  %1186 = vmatprep.subr.mxu0 0.0
  %1187 = vmatpush1.msra.mxu0 0.0
  %1188 = vmatprep.subr.mxu0 0.0
  %1189 = vmatpush1.msra.mxu0 0.0
  %1190 = vmatprep.subr.mxu0 0.0
  %1191 = vmatpush1.msra.mxu0 0.0
  %1192 = vmatprep.subr.mxu0 0.0
  %1193 = vmatpush1.msra.mxu0 0.0
  %1194 = vmatprep.subr.mxu0 0.0
  %1195 = vmatpush1.msra.mxu0 0.0
  %1196 = vmatprep.subr.mxu0 0.0
  %1197 = vmatpush1.msra.mxu0 0.0
  %1198 = vmatprep.subr.mxu0 0.0
  %1199 = vmatpush1.msra.mxu0 0.0
  %1200 = vmatprep.subr.mxu0 0.0
  %1201 = vmatpush1.msra.mxu0 0.0
  %1202 = vmatprep.subr.mxu0 0.0
  %1203 = vmatpush1.msra.mxu0 0.0
  %1204 = vmatprep.subr.mxu0 0.0
  %1205 = vmatpush1.msra.mxu0 0.0
  %1206 = vmatprep.subr.mxu0 0.0
  %1207 = vmatpush1.msra.mxu0 0.0
  %1208 = vmatprep.subr.mxu0 0.0
  %1209 = vmatpush1.msra.mxu0 0.0
  %1210 = vmatprep.subr.mxu0 0.0
  %1211 = vmatpush1.msra.mxu0 0.0
  %1212 = vmatprep.subr.mxu0 0.0
  %1213 = vmatpush1.msra.mxu0 0.0
  %1214 = vmatprep.subr.mxu0 0.0
  %1215 = vmatpush1.msra.mxu0 0.0
  %1216 = vmatprep.subr.mxu0 0.0
  %1217 = vmatpush1.msra.mxu0 0.0
  %1218 = vmatprep.subr.mxu0 0.0
  %1219 = vmatpush1.msra.mxu0 0.0
  %1220 = vmatprep.subr.mxu0 0.0
  %1221 = vmatpush1.msra.mxu0 0.0
  %1222 = vmatprep.subr.mxu0 0.0
  %1223 = vmatpush1.msra.mxu0 0.0
  %1224 = vmatprep.subr.mxu0 0.0
  %1225 = vmatpush1.msra.mxu0 0.0
  %1226 = vmatprep.subr.mxu0 0.0
  %1227 = vmatpush1.msra.mxu0 0.0
  %1228 = vmatprep.subr.mxu0 0.0
  %1229 = vmatpush1.msra.mxu0 0.0
  %1230 = vmatprep.subr.mxu0 0.0
  %1231 = vmatpush1.msra.mxu0 0.0
  %1232 = vmatprep.subr.mxu0 0.0
  %1233 = vmatpush1.msra.mxu0 0.0
  %1234 = vmatprep.mubr.f32.mxu0 0.0
  %1235 = vmatmul.mubr.f32.gmra.mrb[0].mxu0 %v1165
  %v1236 = vpop.f32.mrb[0].mxu0
  %v1237 = vadd.f32 %v1162, %v1236
  %v1238 = vpop.f32.mrb[0].mxu0
  %1239 = vmatprep.mubr.f32.mxu0 0.0
  %1240 = vmatmul.mubr.f32.gmra.mrb[0].mxu0 %v1168
  %v1241 = vpop.f32.mrb[0].mxu0
  %v1242 = vadd.f32 %v1162, %v1241
  %v1243 = vpop.f32.mrb[0].mxu0
  %1244 = vdwg.mxu0
  %1245 = vmatprep.subr.mxu0 0.0
  %1246 = vmatpush1.msra.mxu0 %v1153
  %1247 = vmatprep.subr.mxu0 0.0
  %1248 = vmatpush1.msra.mxu0 %v1154
  %1249 = vmatprep.subr.mxu0 0.0
  %1250 = vmatpush1.msra.mxu0 %v1155
  %1251 = vmatprep.subr.mxu0 0.0
  %1252 = vmatpush1.msra.mxu0 %v1156
  %1253 = vmatprep.subr.mxu0 0.0
  %1254 = vmatpush1.msra.mxu0 0.0
  %1255 = vmatprep.subr.mxu0 0.0
  %1256 = vmatpush1.msra.mxu0 0.0
  %1257 = vmatprep.subr.mxu0 0.0
  %1258 = vmatpush1.msra.mxu0 0.0
  %1259 = vmatprep.subr.mxu0 0.0
  %1260 = vmatpush1.msra.mxu0 0.0
  %1261 = vmatprep.subr.mxu0 0.0
  %1262 = vmatpush1.msra.mxu0 0.0
  %1263 = vmatprep.subr.mxu0 0.0
  %1264 = vmatpush1.msra.mxu0 0.0
  %1265 = vmatprep.subr.mxu0 0.0
  %1266 = vmatpush1.msra.mxu0 0.0
  %1267 = vmatprep.subr.mxu0 0.0
  %1268 = vmatpush1.msra.mxu0 0.0
  %1269 = vmatprep.subr.mxu0 0.0
  %1270 = vmatpush1.msra.mxu0 0.0
  %1271 = vmatprep.subr.mxu0 0.0
  %1272 = vmatpush1.msra.mxu0 0.0
  %1273 = vmatprep.subr.mxu0 0.0
  %1274 = vmatpush1.msra.mxu0 0.0
  %1275 = vmatprep.subr.mxu0 0.0
  %1276 = vmatpush1.msra.mxu0 0.0
  %1277 = vmatprep.subr.mxu0 0.0
  %1278 = vmatpush1.msra.mxu0 0.0
  %1279 = vmatprep.subr.mxu0 0.0
  %1280 = vmatpush1.msra.mxu0 0.0
  %1281 = vmatprep.subr.mxu0 0.0
  %1282 = vmatpush1.msra.mxu0 0.0
  %1283 = vmatprep.subr.mxu0 0.0
  %1284 = vmatpush1.msra.mxu0 0.0
  %1285 = vmatprep.subr.mxu0 0.0
  %1286 = vmatpush1.msra.mxu0 0.0
  %1287 = vmatprep.subr.mxu0 0.0
  %1288 = vmatpush1.msra.mxu0 0.0
  %1289 = vmatprep.subr.mxu0 0.0
  %1290 = vmatpush1.msra.mxu0 0.0
  %1291 = vmatprep.subr.mxu0 0.0
  %1292 = vmatpush1.msra.mxu0 0.0
  %1293 = vmatprep.subr.mxu0 0.0
  %1294 = vmatpush1.msra.mxu0 0.0
  %1295 = vmatprep.subr.mxu0 0.0
  %1296 = vmatpush1.msra.mxu0 0.0
  %1297 = vmatprep.subr.mxu0 0.0
  %1298 = vmatpush1.msra.mxu0 0.0
  %1299 = vmatprep.subr.mxu0 0.0
  %1300 = vmatpush1.msra.mxu0 0.0
  %1301 = vmatprep.subr.mxu0 0.0
  %1302 = vmatpush1.msra.mxu0 0.0
  %1303 = vmatprep.subr.mxu0 0.0
  %1304 = vmatpush1.msra.mxu0 0.0
  %1305 = vmatprep.subr.mxu0 0.0
  %1306 = vmatpush1.msra.mxu0 0.0
  %1307 = vmatprep.subr.mxu0 0.0
  %1308 = vmatpush1.msra.mxu0 0.0
  %1309 = vmatprep.mubr.f32.mxu0 0.0
  %1310 = vmatmul.mubr.f32.gmra.mrb[0].mxu0 %v324
  %v1311 = vpop.f32.mrb[0].mxu0
  %v1312 = vadd.f32 %v1237, %v1311
  %v1313 = vpop.f32.mrb[0].mxu0
  %1314 = vdwg.mxu0
  %v1315 = vxor.u32 %v1312, 2147483648
  %v1316 = vmul.f32 %v1315, 1.442695
  %v1317 = vpow.pop %v1316
  %v1318 = vadd.f32 %v1317, 1.0
  %v1319 = vrcp.pop %v1318
  %v1320 = vmul.f32 1.0, %v1319
  %v1321 = vtanh.pop %v1312
  %v1322 = vmul.f32 %v1320, 0.0
  %1324 = vrot.lane.b32.xlu0 %v1321, 64
  %v1325 = vpop.permute.xlu0 %1324
  %v1327 = vmul.f32 %v1320, %v1325
  %1329 = vrot.lane.b32.xlu0 %v1327, 32
  %v1330 = vpop.permute.xlu0 %1329
  %v1332 = vadd.f32 %v1322, %v1330
  %v1333 = vtanh.pop %v1332
  %1335 = vrot.lane.b32.xlu0 %v1333, 64
  %v1336 = vpop.permute.xlu0 %1335
  %v1338 = vmul.f32 %v1320, %v1336
  %1340 = vrot.lane.b32.xlu0 %v1338, 32
  %v1341 = vpop.permute.xlu0 %1340
  %1343 = vst.msk [vmem:[#allocation2] sm:$0x3] %vm424, %v1341
  %v1345 = vrot.slane %v1237, 2
  %v1347 = vsel %vm322, %v1341, 0
  %1349 = vmatprep.subr.mxu0 0.0
  %1350 = vmatpush1.msra.mxu0 %v1153
  %1351 = vmatprep.subr.mxu0 0.0
  %1352 = vmatpush1.msra.mxu0 %v1154
  %1353 = vmatprep.subr.mxu0 0.0
  %1354 = vmatpush1.msra.mxu0 %v1155
  %1355 = vmatprep.subr.mxu0 0.0
  %1356 = vmatpush1.msra.mxu0 %v1156
  %1357 = vmatprep.subr.mxu0 0.0
  %1358 = vmatpush1.msra.mxu0 0.0
  %1359 = vmatprep.subr.mxu0 0.0
  %1360 = vmatpush1.msra.mxu0 0.0
  %1361 = vmatprep.subr.mxu0 0.0
  %1362 = vmatpush1.msra.mxu0 0.0
  %1363 = vmatprep.subr.mxu0 0.0
  %1364 = vmatpush1.msra.mxu0 0.0
  %1365 = vmatprep.subr.mxu0 0.0
  %1366 = vmatpush1.msra.mxu0 0.0
  %1367 = vmatprep.subr.mxu0 0.0
  %1368 = vmatpush1.msra.mxu0 0.0
  %1369 = vmatprep.subr.mxu0 0.0
  %1370 = vmatpush1.msra.mxu0 0.0
  %1371 = vmatprep.subr.mxu0 0.0
  %1372 = vmatpush1.msra.mxu0 0.0
  %1373 = vmatprep.subr.mxu0 0.0
  %1374 = vmatpush1.msra.mxu0 0.0
  %1375 = vmatprep.subr.mxu0 0.0
  %1376 = vmatpush1.msra.mxu0 0.0
  %1377 = vmatprep.subr.mxu0 0.0
  %1378 = vmatpush1.msra.mxu0 0.0
  %1379 = vmatprep.subr.mxu0 0.0
  %1380 = vmatpush1.msra.mxu0 0.0
  %1381 = vmatprep.subr.mxu0 0.0
  %1382 = vmatpush1.msra.mxu0 0.0
  %1383 = vmatprep.subr.mxu0 0.0
  %1384 = vmatpush1.msra.mxu0 0.0
  %1385 = vmatprep.subr.mxu0 0.0
  %1386 = vmatpush1.msra.mxu0 0.0
  %1387 = vmatprep.subr.mxu0 0.0
  %1388 = vmatpush1.msra.mxu0 0.0
  %1389 = vmatprep.subr.mxu0 0.0
  %1390 = vmatpush1.msra.mxu0 0.0
  %1391 = vmatprep.subr.mxu0 0.0
  %1392 = vmatpush1.msra.mxu0 0.0
  %1393 = vmatprep.subr.mxu0 0.0
  %1394 = vmatpush1.msra.mxu0 0.0
  %1395 = vmatprep.subr.mxu0 0.0
  %1396 = vmatpush1.msra.mxu0 0.0
  %1397 = vmatprep.subr.mxu0 0.0
  %1398 = vmatpush1.msra.mxu0 0.0
  %1399 = vmatprep.subr.mxu0 0.0
  %1400 = vmatpush1.msra.mxu0 0.0
  %1401 = vmatprep.subr.mxu0 0.0
  %1402 = vmatpush1.msra.mxu0 0.0
  %1403 = vmatprep.subr.mxu0 0.0
  %1404 = vmatpush1.msra.mxu0 0.0
  %1405 = vmatprep.subr.mxu0 0.0
  %1406 = vmatpush1.msra.mxu0 0.0
  %1407 = vmatprep.subr.mxu0 0.0
  %1408 = vmatpush1.msra.mxu0 0.0
  %1409 = vmatprep.subr.mxu0 0.0
  %1410 = vmatpush1.msra.mxu0 0.0
  %1411 = vmatprep.subr.mxu0 0.0
  %1412 = vmatpush1.msra.mxu0 0.0
  %1413 = vmatprep.mubr.f32.mxu0 0.0
  %1414 = vmatmul.mubr.f32.gmra.mrb[0].mxu0 %v1347
  %v1415 = vpop.f32.mrb[0].mxu0
  %v1416 = vadd.f32 %v1345, %v1415
  %v1417 = vpop.f32.mrb[0].mxu0
  %1418 = vdwg.mxu0
  %v1419 = vxor.u32 %v1416, 2147483648
  %v1420 = vmul.f32 %v1419, 1.442695
  %v1421 = vpow.pop %v1420
  %v1422 = vadd.f32 %v1421, 1.0
  %v1423 = vrcp.pop %v1422
  %v1424 = vmul.f32 1.0, %v1423
  %v1425 = vtanh.pop %v1416
  %v1426 = vmul.f32 %v1424, %v1332
  %1428 = vrot.lane.b32.xlu0 %v1425, 64
  %v1429 = vpop.permute.xlu0 %1428
  %v1431 = vmul.f32 %v1424, %v1429
  %1433 = vrot.lane.b32.xlu0 %v1431, 32
  %v1434 = vpop.permute.xlu0 %1433
  %v1436 = vadd.f32 %v1426, %v1434
  %v1437 = vtanh.pop %v1436
  %1439 = vrot.lane.b32.xlu0 %v1437, 64
  %v1440 = vpop.permute.xlu0 %1439
  %v1442 = vmul.f32 %v1424, %v1440
  %1444 = vrot.lane.b32.xlu0 %v1442, 32
  %v1445 = vpop.permute.xlu0 %1444
  %1447 = vst.msk [vmem:[#allocation2 + $0x2] sm:$0x3] %vm424, %v1445
  %v1448 = vrot.slane %v1237, 4
  %v1450 = vsel %vm322, %v1445, 0
  %1452 = vmatprep.subr.mxu0 0.0
  %1453 = vmatpush1.msra.mxu0 %v1153
  %1454 = vmatprep.subr.mxu0 0.0
  %1455 = vmatpush1.msra.mxu0 %v1154
  %1456 = vmatprep.subr.mxu0 0.0
  %1457 = vmatpush1.msra.mxu0 %v1155
  %1458 = vmatprep.subr.mxu0 0.0
  %1459 = vmatpush1.msra.mxu0 %v1156
  %1460 = vmatprep.subr.mxu0 0.0
  %1461 = vmatpush1.msra.mxu0 0.0
  %1462 = vmatprep.subr.mxu0 0.0
  %1463 = vmatpush1.msra.mxu0 0.0
  %1464 = vmatprep.subr.mxu0 0.0
  %1465 = vmatpush1.msra.mxu0 0.0
  %1466 = vmatprep.subr.mxu0 0.0
  %1467 = vmatpush1.msra.mxu0 0.0
  %1468 = vmatprep.subr.mxu0 0.0
  %1469 = vmatpush1.msra.mxu0 0.0
  %1470 = vmatprep.subr.mxu0 0.0
  %1471 = vmatpush1.msra.mxu0 0.0
  %1472 = vmatprep.subr.mxu0 0.0
  %1473 = vmatpush1.msra.mxu0 0.0
  %1474 = vmatprep.subr.mxu0 0.0
  %1475 = vmatpush1.msra.mxu0 0.0
  %1476 = vmatprep.subr.mxu0 0.0
  %1477 = vmatpush1.msra.mxu0 0.0
  %1478 = vmatprep.subr.mxu0 0.0
  %1479 = vmatpush1.msra.mxu0 0.0
  %1480 = vmatprep.subr.mxu0 0.0
  %1481 = vmatpush1.msra.mxu0 0.0
  %1482 = vmatprep.subr.mxu0 0.0
  %1483 = vmatpush1.msra.mxu0 0.0
  %1484 = vmatprep.subr.mxu0 0.0
  %1485 = vmatpush1.msra.mxu0 0.0
  %1486 = vmatprep.subr.mxu0 0.0
  %1487 = vmatpush1.msra.mxu0 0.0
  %1488 = vmatprep.subr.mxu0 0.0
  %1489 = vmatpush1.msra.mxu0 0.0
  %1490 = vmatprep.subr.mxu0 0.0
  %1491 = vmatpush1.msra.mxu0 0.0
  %1492 = vmatprep.subr.mxu0 0.0
  %1493 = vmatpush1.msra.mxu0 0.0
  %1494 = vmatprep.subr.mxu0 0.0
  %1495 = vmatpush1.msra.mxu0 0.0
  %1496 = vmatprep.subr.mxu0 0.0
  %1497 = vmatpush1.msra.mxu0 0.0
  %1498 = vmatprep.subr.mxu0 0.0
  %1499 = vmatpush1.msra.mxu0 0.0
  %1500 = vmatprep.subr.mxu0 0.0
  %1501 = vmatpush1.msra.mxu0 0.0
  %1502 = vmatprep.subr.mxu0 0.0
  %1503 = vmatpush1.msra.mxu0 0.0
  %1504 = vmatprep.subr.mxu0 0.0
  %1505 = vmatpush1.msra.mxu0 0.0
  %1506 = vmatprep.subr.mxu0 0.0
  %1507 = vmatpush1.msra.mxu0 0.0
  %1508 = vmatprep.subr.mxu0 0.0
  %1509 = vmatpush1.msra.mxu0 0.0
  %1510 = vmatprep.subr.mxu0 0.0
  %1511 = vmatpush1.msra.mxu0 0.0
  %1512 = vmatprep.subr.mxu0 0.0
  %1513 = vmatpush1.msra.mxu0 0.0
  %1514 = vmatprep.subr.mxu0 0.0
  %1515 = vmatpush1.msra.mxu0 0.0
  %1516 = vmatprep.mubr.f32.mxu0 0.0
  %1517 = vmatmul.mubr.f32.gmra.mrb[0].mxu0 %v1450
  %v1518 = vpop.f32.mrb[0].mxu0
  %v1519 = vadd.f32 %v1448, %v1518
  %v1520 = vpop.f32.mrb[0].mxu0
  %1521 = vdwg.mxu0
  %v1522 = vxor.u32 %v1519, 2147483648
  %v1523 = vmul.f32 %v1522, 1.442695
  %v1524 = vpow.pop %v1523
  %v1525 = vadd.f32 %v1524, 1.0
  %v1526 = vrcp.pop %v1525
  %v1527 = vmul.f32 1.0, %v1526
  %v1528 = vtanh.pop %v1519
  %v1529 = vmul.f32 %v1527, %v1436
  %1531 = vrot.lane.b32.xlu0 %v1528, 64
  %v1532 = vpop.permute.xlu0 %1531
  %v1534 = vmul.f32 %v1527, %v1532
  %1536 = vrot.lane.b32.xlu0 %v1534, 32
  %v1537 = vpop.permute.xlu0 %1536
  %v1539 = vadd.f32 %v1529, %v1537
  %v1540 = vtanh.pop %v1539
  %1542 = vrot.lane.b32.xlu0 %v1540, 64
  %v1543 = vpop.permute.xlu0 %1542
  %v1545 = vmul.f32 %v1527, %v1543
  %1547 = vrot.lane.b32.xlu0 %v1545, 32
  %v1548 = vpop.permute.xlu0 %1547
  %1550 = vst.msk [vmem:[#allocation2 + $0x4] sm:$0x3] %vm424, %v1548
  %v1551 = vrot.slane %v1237, 6
  %v1553 = vsel %vm322, %v1548, 0
  %1555 = vmatprep.subr.mxu0 0.0
  %1556 = vmatpush1.msra.mxu0 %v1153
  %1557 = vmatprep.subr.mxu0 0.0
  %1558 = vmatpush1.msra.mxu0 %v1154
  %1559 = vmatprep.subr.mxu0 0.0
  %1560 = vmatpush1.msra.mxu0 %v1155
  %1561 = vmatprep.subr.mxu0 0.0
  %1562 = vmatpush1.msra.mxu0 %v1156
  %1563 = vmatprep.subr.mxu0 0.0
  %1564 = vmatpush1.msra.mxu0 0.0
  %1565 = vmatprep.subr.mxu0 0.0
  %1566 = vmatpush1.msra.mxu0 0.0
  %1567 = vmatprep.subr.mxu0 0.0
  %1568 = vmatpush1.msra.mxu0 0.0
  %1569 = vmatprep.subr.mxu0 0.0
  %1570 = vmatpush1.msra.mxu0 0.0
  %1571 = vmatprep.subr.mxu0 0.0
  %1572 = vmatpush1.msra.mxu0 0.0
  %1573 = vmatprep.subr.mxu0 0.0
  %1574 = vmatpush1.msra.mxu0 0.0
  %1575 = vmatprep.subr.mxu0 0.0
  %1576 = vmatpush1.msra.mxu0 0.0
  %1577 = vmatprep.subr.mxu0 0.0
  %1578 = vmatpush1.msra.mxu0 0.0
  %1579 = vmatprep.subr.mxu0 0.0
  %1580 = vmatpush1.msra.mxu0 0.0
  %1581 = vmatprep.subr.mxu0 0.0
  %1582 = vmatpush1.msra.mxu0 0.0
  %1583 = vmatprep.subr.mxu0 0.0
  %1584 = vmatpush1.msra.mxu0 0.0
  %1585 = vmatprep.subr.mxu0 0.0
  %1586 = vmatpush1.msra.mxu0 0.0
  %1587 = vmatprep.subr.mxu0 0.0
  %1588 = vmatpush1.msra.mxu0 0.0
  %1589 = vmatprep.subr.mxu0 0.0
  %1590 = vmatpush1.msra.mxu0 0.0
  %1591 = vmatprep.subr.mxu0 0.0
  %1592 = vmatpush1.msra.mxu0 0.0
  %1593 = vmatprep.subr.mxu0 0.0
  %1594 = vmatpush1.msra.mxu0 0.0
  %1595 = vmatprep.subr.mxu0 0.0
  %1596 = vmatpush1.msra.mxu0 0.0
  %1597 = vmatprep.subr.mxu0 0.0
  %1598 = vmatpush1.msra.mxu0 0.0
  %1599 = vmatprep.subr.mxu0 0.0
  %1600 = vmatpush1.msra.mxu0 0.0
  %1601 = vmatprep.subr.mxu0 0.0
  %1602 = vmatpush1.msra.mxu0 0.0
  %1603 = vmatprep.subr.mxu0 0.0
  %1604 = vmatpush1.msra.mxu0 0.0
  %1605 = vmatprep.subr.mxu0 0.0
  %1606 = vmatpush1.msra.mxu0 0.0
  %1607 = vmatprep.subr.mxu0 0.0
  %1608 = vmatpush1.msra.mxu0 0.0
  %1609 = vmatprep.subr.mxu0 0.0
  %1610 = vmatpush1.msra.mxu0 0.0
  %1611 = vmatprep.subr.mxu0 0.0
  %1612 = vmatpush1.msra.mxu0 0.0
  %1613 = vmatprep.subr.mxu0 0.0
  %1614 = vmatpush1.msra.mxu0 0.0
  %1615 = vmatprep.subr.mxu0 0.0
  %1616 = vmatpush1.msra.mxu0 0.0
  %1617 = vmatprep.subr.mxu0 0.0
  %1618 = vmatpush1.msra.mxu0 0.0
  %1619 = vmatprep.mubr.f32.mxu0 0.0
  %1620 = vmatmul.mubr.f32.gmra.mrb[0].mxu0 %v1553
  %v1621 = vpop.f32.mrb[0].mxu0
  %v1622 = vadd.f32 %v1551, %v1621
  %v1623 = vpop.f32.mrb[0].mxu0
  %1624 = vdwg.mxu0
  %v1625 = vxor.u32 %v1622, 2147483648
  %v1626 = vmul.f32 %v1625, 1.442695
  %v1627 = vpow.pop %v1626
  %v1628 = vadd.f32 %v1627, 1.0
  %v1629 = vrcp.pop %v1628
  %v1630 = vmul.f32 1.0, %v1629
  %v1631 = vtanh.pop %v1622
  %v1632 = vmul.f32 %v1630, %v1539
  %1634 = vrot.lane.b32.xlu0 %v1631, 64
  %v1635 = vpop.permute.xlu0 %1634
  %v1637 = vmul.f32 %v1630, %v1635
  %1639 = vrot.lane.b32.xlu0 %v1637, 32
  %v1640 = vpop.permute.xlu0 %1639
  %v1642 = vadd.f32 %v1632, %v1640
  %v1643 = vtanh.pop %v1642
  %1645 = vrot.lane.b32.xlu0 %v1643, 64
  %v1646 = vpop.permute.xlu0 %1645
  %v1648 = vmul.f32 %v1630, %v1646
  %1650 = vrot.lane.b32.xlu0 %v1648, 32
  %v1651 = vpop.permute.xlu0 %1650
  %1653 = vst.msk [vmem:[#allocation2 + $0x6] sm:$0x3] %vm424, %v1651
  %v1654 = vsel %vm322, %v1651, 0
  %1656 = vmatprep.subr.mxu0 0.0
  %1657 = vmatpush1.msra.mxu0 %v1153
  %1658 = vmatprep.subr.mxu0 0.0
  %1659 = vmatpush1.msra.mxu0 %v1154
  %1660 = vmatprep.subr.mxu0 0.0
  %1661 = vmatpush1.msra.mxu0 %v1155
  %1662 = vmatprep.subr.mxu0 0.0
  %1663 = vmatpush1.msra.mxu0 %v1156
  %1664 = vmatprep.subr.mxu0 0.0
  %1665 = vmatpush1.msra.mxu0 0.0
  %1666 = vmatprep.subr.mxu0 0.0
  %1667 = vmatpush1.msra.mxu0 0.0
  %1668 = vmatprep.subr.mxu0 0.0
  %1669 = vmatpush1.msra.mxu0 0.0
  %1670 = vmatprep.subr.mxu0 0.0
  %1671 = vmatpush1.msra.mxu0 0.0
  %1672 = vmatprep.subr.mxu0 0.0
  %1673 = vmatpush1.msra.mxu0 0.0
  %1674 = vmatprep.subr.mxu0 0.0
  %1675 = vmatpush1.msra.mxu0 0.0
  %1676 = vmatprep.subr.mxu0 0.0
  %1677 = vmatpush1.msra.mxu0 0.0
  %1678 = vmatprep.subr.mxu0 0.0
  %1679 = vmatpush1.msra.mxu0 0.0
  %1680 = vmatprep.subr.mxu0 0.0
  %1681 = vmatpush1.msra.mxu0 0.0
  %1682 = vmatprep.subr.mxu0 0.0
  %1683 = vmatpush1.msra.mxu0 0.0
  %1684 = vmatprep.subr.mxu0 0.0
  %1685 = vmatpush1.msra.mxu0 0.0
  %1686 = vmatprep.subr.mxu0 0.0
  %1687 = vmatpush1.msra.mxu0 0.0
  %1688 = vmatprep.subr.mxu0 0.0
  %1689 = vmatpush1.msra.mxu0 0.0
  %1690 = vmatprep.subr.mxu0 0.0
  %1691 = vmatpush1.msra.mxu0 0.0
  %1692 = vmatprep.subr.mxu0 0.0
  %1693 = vmatpush1.msra.mxu0 0.0
  %1694 = vmatprep.subr.mxu0 0.0
  %1695 = vmatpush1.msra.mxu0 0.0
  %1696 = vmatprep.subr.mxu0 0.0
  %1697 = vmatpush1.msra.mxu0 0.0
  %1698 = vmatprep.subr.mxu0 0.0
  %1699 = vmatpush1.msra.mxu0 0.0
  %1700 = vmatprep.subr.mxu0 0.0
  %1701 = vmatpush1.msra.mxu0 0.0
  %1702 = vmatprep.subr.mxu0 0.0
  %1703 = vmatpush1.msra.mxu0 0.0
  %1704 = vmatprep.subr.mxu0 0.0
  %1705 = vmatpush1.msra.mxu0 0.0
  %1706 = vmatprep.subr.mxu0 0.0
  %1707 = vmatpush1.msra.mxu0 0.0
  %1708 = vmatprep.subr.mxu0 0.0
  %1709 = vmatpush1.msra.mxu0 0.0
  %1710 = vmatprep.subr.mxu0 0.0
  %1711 = vmatpush1.msra.mxu0 0.0
  %1712 = vmatprep.subr.mxu0 0.0
  %1713 = vmatpush1.msra.mxu0 0.0
  %1714 = vmatprep.subr.mxu0 0.0
  %1715 = vmatpush1.msra.mxu0 0.0
  %1716 = vmatprep.subr.mxu0 0.0
  %1717 = vmatpush1.msra.mxu0 0.0
  %1718 = vmatprep.subr.mxu0 0.0
  %1719 = vmatpush1.msra.mxu0 0.0
  %1720 = vmatprep.mubr.f32.mxu0 0.0
  %1721 = vmatmul.mubr.f32.gmra.mrb[0].mxu0 %v1654
  %v1722 = vpop.f32.mrb[0].mxu0
  %v1723 = vadd.f32 %v1242, %v1722
  %v1724 = vpop.f32.mrb[0].mxu0
  %1725 = vdwg.mxu0
  %v1726 = vxor.u32 %v1723, 2147483648
  %v1727 = vmul.f32 %v1726, 1.442695
  %v1728 = vpow.pop %v1727
  %v1729 = vadd.f32 %v1728, 1.0
  %v1730 = vrcp.pop %v1729
  %v1731 = vmul.f32 1.0, %v1730
  %v1732 = vtanh.pop %v1723
  %v1733 = vmul.f32 %v1731, %v1642
  %1735 = vrot.lane.b32.xlu0 %v1732, 64
  %v1736 = vpop.permute.xlu0 %1735
  %v1738 = vmul.f32 %v1731, %v1736
  %1740 = vrot.lane.b32.xlu0 %v1738, 32
  %v1741 = vpop.permute.xlu0 %1740
  %v1743 = vadd.f32 %v1733, %v1741
  %v1744 = vtanh.pop %v1743
  %1746 = vrot.lane.b32.xlu0 %v1744, 64
  %v1747 = vpop.permute.xlu0 %1746
  %v1749 = vmul.f32 %v1731, %v1747
  %1751 = vrot.lane.b32.xlu0 %v1749, 32
  %v1752 = vpop.permute.xlu0 %1751
  %1754 = vst.msk [vmem:[#allocation2 + $0x8] sm:$0x3] %vm424, %v1752
  %v1756 = vrot.slane %v1242, 2
  %v1758 = vsel %vm322, %v1752, 0
  %1760 = vmatprep.subr.mxu0 0.0
  %1761 = vmatpush1.msra.mxu0 %v1153
  %1762 = vmatprep.subr.mxu0 0.0
  %1763 = vmatpush1.msra.mxu0 %v1154
  %1764 = vmatprep.subr.mxu0 0.0
  %1765 = vmatpush1.msra.mxu0 %v1155
  %1766 = vmatprep.subr.mxu0 0.0
  %1767 = vmatpush1.msra.mxu0 %v1156
  %1768 = vmatprep.subr.mxu0 0.0
  %1769 = vmatpush1.msra.mxu0 0.0
  %1770 = vmatprep.subr.mxu0 0.0
  %1771 = vmatpush1.msra.mxu0 0.0
  %1772 = vmatprep.subr.mxu0 0.0
  %1773 = vmatpush1.msra.mxu0 0.0
  %1774 = vmatprep.subr.mxu0 0.0
  %1775 = vmatpush1.msra.mxu0 0.0
  %1776 = vmatprep.subr.mxu0 0.0
  %1777 = vmatpush1.msra.mxu0 0.0
  %1778 = vmatprep.subr.mxu0 0.0
  %1779 = vmatpush1.msra.mxu0 0.0
  %1780 = vmatprep.subr.mxu0 0.0
  %1781 = vmatpush1.msra.mxu0 0.0
  %1782 = vmatprep.subr.mxu0 0.0
  %1783 = vmatpush1.msra.mxu0 0.0
  %1784 = vmatprep.subr.mxu0 0.0
  %1785 = vmatpush1.msra.mxu0 0.0
  %1786 = vmatprep.subr.mxu0 0.0
  %1787 = vmatpush1.msra.mxu0 0.0
  %1788 = vmatprep.subr.mxu0 0.0
  %1789 = vmatpush1.msra.mxu0 0.0
  %1790 = vmatprep.subr.mxu0 0.0
  %1791 = vmatpush1.msra.mxu0 0.0
  %1792 = vmatprep.subr.mxu0 0.0
  %1793 = vmatpush1.msra.mxu0 0.0
  %1794 = vmatprep.subr.mxu0 0.0
  %1795 = vmatpush1.msra.mxu0 0.0
  %1796 = vmatprep.subr.mxu0 0.0
  %1797 = vmatpush1.msra.mxu0 0.0
  %1798 = vmatprep.subr.mxu0 0.0
  %1799 = vmatpush1.msra.mxu0 0.0
  %1800 = vmatprep.subr.mxu0 0.0
  %1801 = vmatpush1.msra.mxu0 0.0
  %1802 = vmatprep.subr.mxu0 0.0
  %1803 = vmatpush1.msra.mxu0 0.0
  %1804 = vmatprep.subr.mxu0 0.0
  %1805 = vmatpush1.msra.mxu0 0.0
  %1806 = vmatprep.subr.mxu0 0.0
  %1807 = vmatpush1.msra.mxu0 0.0
  %1808 = vmatprep.subr.mxu0 0.0
  %1809 = vmatpush1.msra.mxu0 0.0
  %1810 = vmatprep.subr.mxu0 0.0
  %1811 = vmatpush1.msra.mxu0 0.0
  %1812 = vmatprep.subr.mxu0 0.0
  %1813 = vmatpush1.msra.mxu0 0.0
  %1814 = vmatprep.subr.mxu0 0.0
  %1815 = vmatpush1.msra.mxu0 0.0
  %1816 = vmatprep.subr.mxu0 0.0
  %1817 = vmatpush1.msra.mxu0 0.0
  %1818 = vmatprep.subr.mxu0 0.0
  %1819 = vmatpush1.msra.mxu0 0.0
  %1820 = vmatprep.subr.mxu0 0.0
  %1821 = vmatpush1.msra.mxu0 0.0
  %1822 = vmatprep.subr.mxu0 0.0
  %1823 = vmatpush1.msra.mxu0 0.0
  %1824 = vmatprep.mubr.f32.mxu0 0.0
  %1825 = vmatmul.mubr.f32.gmra.mrb[0].mxu0 %v1758
  %v1826 = vpop.f32.mrb[0].mxu0
  %v1827 = vadd.f32 %v1756, %v1826
  %v1828 = vpop.f32.mrb[0].mxu0
  %1829 = vdwg.mxu0
  %v1830 = vxor.u32 %v1827, 2147483648
  %v1831 = vmul.f32 %v1830, 1.442695
  %v1832 = vpow.pop %v1831
  %v1833 = vadd.f32 %v1832, 1.0
  %v1834 = vrcp.pop %v1833
  %v1835 = vmul.f32 1.0, %v1834
  %v1836 = vtanh.pop %v1827
  %v1837 = vmul.f32 %v1835, %v1743
  %1839 = vrot.lane.b32.xlu0 %v1836, 64
  %v1840 = vpop.permute.xlu0 %1839
  %v1842 = vmul.f32 %v1835, %v1840
  %1844 = vrot.lane.b32.xlu0 %v1842, 32
  %v1845 = vpop.permute.xlu0 %1844
  %v1847 = vadd.f32 %v1837, %v1845
  %v1848 = vtanh.pop %v1847
  %1850 = vrot.lane.b32.xlu0 %v1848, 64
  %v1851 = vpop.permute.xlu0 %1850
  %v1853 = vmul.f32 %v1835, %v1851
  %1855 = vrot.lane.b32.xlu0 %v1853, 32
  %v1856 = vpop.permute.xlu0 %1855
  %1858 = vst.msk [vmem:[#allocation2 + $0xa] sm:$0x3] %vm424, %v1856
  %v1859 = vrot.slane %v1242, 4
  %v1861 = vsel %vm322, %v1856, 0
  %1863 = vmatprep.subr.mxu0 0.0
  %1864 = vmatpush1.msra.mxu0 %v1153
  %1865 = vmatprep.subr.mxu0 0.0
  %1866 = vmatpush1.msra.mxu0 %v1154
  %1867 = vmatprep.subr.mxu0 0.0
  %1868 = vmatpush1.msra.mxu0 %v1155
  %1869 = vmatprep.subr.mxu0 0.0
  %1870 = vmatpush1.msra.mxu0 %v1156
  %1871 = vmatprep.subr.mxu0 0.0
  %1872 = vmatpush1.msra.mxu0 0.0
  %1873 = vmatprep.subr.mxu0 0.0
  %1874 = vmatpush1.msra.mxu0 0.0
  %1875 = vmatprep.subr.mxu0 0.0
  %1876 = vmatpush1.msra.mxu0 0.0
  %1877 = vmatprep.subr.mxu0 0.0
  %1878 = vmatpush1.msra.mxu0 0.0
  %1879 = vmatprep.subr.mxu0 0.0
  %1880 = vmatpush1.msra.mxu0 0.0
  %1881 = vmatprep.subr.mxu0 0.0
  %1882 = vmatpush1.msra.mxu0 0.0
  %1883 = vmatprep.subr.mxu0 0.0
  %1884 = vmatpush1.msra.mxu0 0.0
  %1885 = vmatprep.subr.mxu0 0.0
  %1886 = vmatpush1.msra.mxu0 0.0
  %1887 = vmatprep.subr.mxu0 0.0
  %1888 = vmatpush1.msra.mxu0 0.0
  %1889 = vmatprep.subr.mxu0 0.0
  %1890 = vmatpush1.msra.mxu0 0.0
  %1891 = vmatprep.subr.mxu0 0.0
  %1892 = vmatpush1.msra.mxu0 0.0
  %1893 = vmatprep.subr.mxu0 0.0
  %1894 = vmatpush1.msra.mxu0 0.0
  %1895 = vmatprep.subr.mxu0 0.0
  %1896 = vmatpush1.msra.mxu0 0.0
  %1897 = vmatprep.subr.mxu0 0.0
  %1898 = vmatpush1.msra.mxu0 0.0
  %1899 = vmatprep.subr.mxu0 0.0
  %1900 = vmatpush1.msra.mxu0 0.0
  %1901 = vmatprep.subr.mxu0 0.0
  %1902 = vmatpush1.msra.mxu0 0.0
  %1903 = vmatprep.subr.mxu0 0.0
  %1904 = vmatpush1.msra.mxu0 0.0
  %1905 = vmatprep.subr.mxu0 0.0
  %1906 = vmatpush1.msra.mxu0 0.0
  %1907 = vmatprep.subr.mxu0 0.0
  %1908 = vmatpush1.msra.mxu0 0.0
  %1909 = vmatprep.subr.mxu0 0.0
  %1910 = vmatpush1.msra.mxu0 0.0
  %1911 = vmatprep.subr.mxu0 0.0
  %1912 = vmatpush1.msra.mxu0 0.0
  %1913 = vmatprep.subr.mxu0 0.0
  %1914 = vmatpush1.msra.mxu0 0.0
  %1915 = vmatprep.subr.mxu0 0.0
  %1916 = vmatpush1.msra.mxu0 0.0
  %1917 = vmatprep.subr.mxu0 0.0
  %1918 = vmatpush1.msra.mxu0 0.0
  %1919 = vmatprep.subr.mxu0 0.0
  %1920 = vmatpush1.msra.mxu0 0.0
  %1921 = vmatprep.subr.mxu0 0.0
  %1922 = vmatpush1.msra.mxu0 0.0
  %1923 = vmatprep.subr.mxu0 0.0
  %1924 = vmatpush1.msra.mxu0 0.0
  %1925 = vmatprep.subr.mxu0 0.0
  %1926 = vmatpush1.msra.mxu0 0.0
  %1927 = vmatprep.mubr.f32.mxu0 0.0
  %1928 = vmatmul.mubr.f32.gmra.mrb[0].mxu0 %v1861
  %v1929 = vpop.f32.mrb[0].mxu0
  %v1930 = vadd.f32 %v1859, %v1929
  %v1931 = vpop.f32.mrb[0].mxu0
  %1932 = vdwg.mxu0
  %v1933 = vxor.u32 %v1930, 2147483648
  %v1934 = vmul.f32 %v1933, 1.442695
  %v1935 = vpow.pop %v1934
  %v1936 = vadd.f32 %v1935, 1.0
  %v1937 = vrcp.pop %v1936
  %v1938 = vmul.f32 1.0, %v1937
  %v1939 = vtanh.pop %v1930
  %v1940 = vmul.f32 %v1938, %v1847
  %1942 = vrot.lane.b32.xlu0 %v1939, 64
  %v1943 = vpop.permute.xlu0 %1942
  %v1945 = vmul.f32 %v1938, %v1943
  %1947 = vrot.lane.b32.xlu0 %v1945, 32
  %v1948 = vpop.permute.xlu0 %1947
  %v1950 = vadd.f32 %v1940, %v1948
  %v1951 = vtanh.pop %v1950
  %1953 = vrot.lane.b32.xlu0 %v1951, 64
  %v1954 = vpop.permute.xlu0 %1953
  %v1956 = vmul.f32 %v1938, %v1954
  %1958 = vrot.lane.b32.xlu0 %v1956, 32
  %v1959 = vpop.permute.xlu0 %1958
  %1961 = vst.msk [vmem:[#allocation2 + $0xc] sm:$0x3] %vm424, %v1959
  %v1962 = vrot.slane %v1242, 6
  %v1964 = vsel %vm322, %v1959, 0
  %1966 = vmatprep.subr.mxu0 0.0
  %1967 = vmatpush1.msra.mxu0 %v1153
  %1968 = vmatprep.subr.mxu0 0.0
  %1969 = vmatpush1.msra.mxu0 %v1154
  %1970 = vmatprep.subr.mxu0 0.0
  %1971 = vmatpush1.msra.mxu0 %v1155
  %1972 = vmatprep.subr.mxu0 0.0
  %1973 = vmatpush1.msra.mxu0 %v1156
  %1974 = vmatprep.subr.mxu0 0.0
  %1975 = vmatpush1.msra.mxu0 0.0
  %1976 = vmatprep.subr.mxu0 0.0
  %1977 = vmatpush1.msra.mxu0 0.0
  %1978 = vmatprep.subr.mxu0 0.0
  %1979 = vmatpush1.msra.mxu0 0.0
  %1980 = vmatprep.subr.mxu0 0.0
  %1981 = vmatpush1.msra.mxu0 0.0
  %1982 = vmatprep.subr.mxu0 0.0
  %1983 = vmatpush1.msra.mxu0 0.0
  %1984 = vmatprep.subr.mxu0 0.0
  %1985 = vmatpush1.msra.mxu0 0.0
  %1986 = vmatprep.subr.mxu0 0.0
  %1987 = vmatpush1.msra.mxu0 0.0
  %1988 = vmatprep.subr.mxu0 0.0
  %1989 = vmatpush1.msra.mxu0 0.0
  %1990 = vmatprep.subr.mxu0 0.0
  %1991 = vmatpush1.msra.mxu0 0.0
  %1992 = vmatprep.subr.mxu0 0.0
  %1993 = vmatpush1.msra.mxu0 0.0
  %1994 = vmatprep.subr.mxu0 0.0
  %1995 = vmatpush1.msra.mxu0 0.0
  %1996 = vmatprep.subr.mxu0 0.0
  %1997 = vmatpush1.msra.mxu0 0.0
  %1998 = vmatprep.subr.mxu0 0.0
  %1999 = vmatpush1.msra.mxu0 0.0
  %2000 = vmatprep.subr.mxu0 0.0
  %2001 = vmatpush1.msra.mxu0 0.0
  %2002 = vmatprep.subr.mxu0 0.0
  %2003 = vmatpush1.msra.mxu0 0.0
  %2004 = vmatprep.subr.mxu0 0.0
  %2005 = vmatpush1.msra.mxu0 0.0
  %2006 = vmatprep.subr.mxu0 0.0
  %2007 = vmatpush1.msra.mxu0 0.0
  %2008 = vmatprep.subr.mxu0 0.0
  %2009 = vmatpush1.msra.mxu0 0.0
  %2010 = vmatprep.subr.mxu0 0.0
  %2011 = vmatpush1.msra.mxu0 0.0
  %2012 = vmatprep.subr.mxu0 0.0
  %2013 = vmatpush1.msra.mxu0 0.0
  %2014 = vmatprep.subr.mxu0 0.0
  %2015 = vmatpush1.msra.mxu0 0.0
  %2016 = vmatprep.subr.mxu0 0.0
  %2017 = vmatpush1.msra.mxu0 0.0
  %2018 = vmatprep.subr.mxu0 0.0
  %2019 = vmatpush1.msra.mxu0 0.0
  %2020 = vmatprep.subr.mxu0 0.0
  %2021 = vmatpush1.msra.mxu0 0.0
  %2022 = vmatprep.subr.mxu0 0.0
  %2023 = vmatpush1.msra.mxu0 0.0
  %2024 = vmatprep.subr.mxu0 0.0
  %2025 = vmatpush1.msra.mxu0 0.0
  %2026 = vmatprep.subr.mxu0 0.0
  %2027 = vmatpush1.msra.mxu0 0.0
  %2028 = vmatprep.subr.mxu0 0.0
  %2029 = vmatpush1.msra.mxu0 0.0
  %2030 = vmatprep.mubr.f32.mxu0 0.0
  %2031 = vmatmul.mubr.f32.gmra.mrb[0].mxu0 %v1964
  %v2032 = vpop.f32.mrb[0].mxu0
  %v2033 = vadd.f32 %v1962, %v2032
  %v2034 = vpop.f32.mrb[0].mxu0
  %2035 = vdwg.mxu0
  %v2036 = vxor.u32 %v2033, 2147483648
  %v2037 = vmul.f32 %v2036, 1.442695
  %v2038 = vpow.pop %v2037
  %v2039 = vadd.f32 %v2038, 1.0
  %v2040 = vrcp.pop %v2039
  %v2041 = vmul.f32 1.0, %v2040
  %v2042 = vtanh.pop %v2033
  %v2043 = vmul.f32 %v2041, %v1950
  %2045 = vrot.lane.b32.xlu0 %v2042, 64
  %v2046 = vpop.permute.xlu0 %2045
  %v2048 = vmul.f32 %v2041, %v2046
  %2050 = vrot.lane.b32.xlu0 %v2048, 32
  %v2051 = vpop.permute.xlu0 %2050
  %v2053 = vadd.f32 %v2043, %v2051
  %v2054 = vtanh.pop %v2053
  %2056 = vrot.lane.b32.xlu0 %v2054, 64
  %v2057 = vpop.permute.xlu0 %2056
  %v2059 = vmul.f32 %v2041, %v2057
  %2061 = vrot.lane.b32.xlu0 %v2059, 32
  %v2062 = vpop.permute.xlu0 %2061
  %2064 = vst.msk [vmem:[#allocation2 + $0xe] sm:$0x3] %vm424, %v2062
  %v2065 = vld [vmem:[#allocation2] sm:$0xff]
  %v2066 = vld [vmem:[#allocation2 + $0x8] sm:$0xff]
  %v2067 = vld [vmem:[%s11] sm:$0xff]
  %v2068 = vld [vmem:[%s11 + $0x8] sm:$0xff]
  %v2069 = vld [vmem:[%s11 + $0x10] sm:$0xff]
  %v2070 = vld [vmem:[%s11 + $0x18] sm:$0xff]
  %v2071 = vld [vmem:[%s12] sm:$0x1]
  %v2073 = vlaneseq
  %v2074 = vshrl.u32 %v2073, 7
  %v2075 = vsub.s32 0, %v2074
  %v2076 = vrot.slane %v2071, %v2075
  %v2079 = vsel %vm322, %v2065, 0
  %v2082 = vsel %vm322, %v2066, 0
  %2084 = vmatprep.subr.mxu0 0.0
  %2085 = vmatpush1.msra.mxu0 %v2067
  %2086 = vmatprep.subr.mxu0 0.0
  %2087 = vmatpush1.msra.mxu0 %v2068
  %2088 = vmatprep.subr.mxu0 0.0
  %2089 = vmatpush1.msra.mxu0 %v2069
  %2090 = vmatprep.subr.mxu0 0.0
  %2091 = vmatpush1.msra.mxu0 %v2070
  %2092 = vmatprep.subr.mxu0 0.0
  %2093 = vmatpush1.msra.mxu0 0.0
  %2094 = vmatprep.subr.mxu0 0.0
  %2095 = vmatpush1.msra.mxu0 0.0
  %2096 = vmatprep.subr.mxu0 0.0
  %2097 = vmatpush1.msra.mxu0 0.0
  %2098 = vmatprep.subr.mxu0 0.0
  %2099 = vmatpush1.msra.mxu0 0.0
  %2100 = vmatprep.subr.mxu0 0.0
  %2101 = vmatpush1.msra.mxu0 0.0
  %2102 = vmatprep.subr.mxu0 0.0
  %2103 = vmatpush1.msra.mxu0 0.0
  %2104 = vmatprep.subr.mxu0 0.0
  %2105 = vmatpush1.msra.mxu0 0.0
  %2106 = vmatprep.subr.mxu0 0.0
  %2107 = vmatpush1.msra.mxu0 0.0
  %2108 = vmatprep.subr.mxu0 0.0
  %2109 = vmatpush1.msra.mxu0 0.0
  %2110 = vmatprep.subr.mxu0 0.0
  %2111 = vmatpush1.msra.mxu0 0.0
  %2112 = vmatprep.subr.mxu0 0.0
  %2113 = vmatpush1.msra.mxu0 0.0
  %2114 = vmatprep.subr.mxu0 0.0
  %2115 = vmatpush1.msra.mxu0 0.0
  %2116 = vmatprep.subr.mxu0 0.0
  %2117 = vmatpush1.msra.mxu0 0.0
  %2118 = vmatprep.subr.mxu0 0.0
  %2119 = vmatpush1.msra.mxu0 0.0
  %2120 = vmatprep.subr.mxu0 0.0
  %2121 = vmatpush1.msra.mxu0 0.0
  %2122 = vmatprep.subr.mxu0 0.0
  %2123 = vmatpush1.msra.mxu0 0.0
  %2124 = vmatprep.subr.mxu0 0.0
  %2125 = vmatpush1.msra.mxu0 0.0
  %2126 = vmatprep.subr.mxu0 0.0
  %2127 = vmatpush1.msra.mxu0 0.0
  %2128 = vmatprep.subr.mxu0 0.0
  %2129 = vmatpush1.msra.mxu0 0.0
  %2130 = vmatprep.subr.mxu0 0.0
  %2131 = vmatpush1.msra.mxu0 0.0
  %2132 = vmatprep.subr.mxu0 0.0
  %2133 = vmatpush1.msra.mxu0 0.0
  %2134 = vmatprep.subr.mxu0 0.0
  %2135 = vmatpush1.msra.mxu0 0.0
  %2136 = vmatprep.subr.mxu0 0.0
  %2137 = vmatpush1.msra.mxu0 0.0
  %2138 = vmatprep.subr.mxu0 0.0
  %2139 = vmatpush1.msra.mxu0 0.0
  %2140 = vmatprep.subr.mxu0 0.0
  %2141 = vmatpush1.msra.mxu0 0.0
  %2142 = vmatprep.subr.mxu0 0.0
  %2143 = vmatpush1.msra.mxu0 0.0
  %2144 = vmatprep.subr.mxu0 0.0
  %2145 = vmatpush1.msra.mxu0 0.0
  %2146 = vmatprep.subr.mxu0 0.0
  %2147 = vmatpush1.msra.mxu0 0.0
  %2148 = vmatprep.mubr.f32.mxu0 0.0
  %2149 = vmatmul.mubr.f32.gmra.mrb[0].mxu0 %v2079
  %v2150 = vpop.f32.mrb[0].mxu0
  %v2151 = vadd.f32 %v2076, %v2150
  %v2152 = vpop.f32.mrb[0].mxu0
  %2153 = vmatprep.mubr.f32.mxu0 0.0
  %2154 = vmatmul.mubr.f32.gmra.mrb[0].mxu0 %v2082
  %v2155 = vpop.f32.mrb[0].mxu0
  %v2156 = vadd.f32 %v2076, %v2155
  %v2157 = vpop.f32.mrb[0].mxu0
  %2158 = vdwg.mxu0
  %2159 = vst [vmem:[%s13] sm:$0xff] %v2151
  %2160 = vst [vmem:[%s13 + $0x8] sm:$0xff] %v2156
  // Predicated region
  $region54: #{caption_generator_forward.1} parent=0 // pred_check
    _
  $region55: #{caption_generator_forward.1} parent=0 // pred_check_branch
    %2162 = sbr.rel (0) target = $region57
  $region56: #{caption_generator_forward.1} parent=0 // pred_region
    _
  $region57: #{caption_generator_forward.1} parent=0 // pred_fallthru
    _
  // Predicated region
  $region58: #{caption_generator_forward.1} parent=0 // pred_check
    _
  $region59: #{caption_generator_forward.1} parent=0 // pred_check_branch
    %2164 = sbr.rel (0) target = $region61
  $region60: #{caption_generator_forward.1} parent=0 // pred_region
    _
  $region61: #{caption_generator_forward.1} parent=0 // pred_fallthru
    _

</llo_original>
